<compile_context>
chip_gen: v7x
topology: tpu7x:2x2x1
jax: 0.10.0
libtpu: 0.0.40
codegen_flags: <defaults>
</compile_context>

<pallas_src>
import jax
import jax.numpy as jnp
from jax.experimental import pallas as pl
from jax.experimental.pallas import tpu as pltpu


def gcn_question_kernel(a_ref, x_ref, len_ref, w1_ref, b1_ref, w2_ref, b2_ref,
                        words_ref, q_ref):
    """2-layer GCN forward for a tile of TB questions.

    a_ref:     (TB, L, L)    normalized adjacency (with self loops), stream dtype
    x_ref:     (TB, L, Din)  word embeddings (padded rows zero), stream dtype
    len_ref:   (TB, 1)       int32 question lengths
    w1_ref:    (Din, H)      b1_ref: (1, H)    (biases are f32)
    w2_ref:    (H, Dout)     b2_ref: (1, Dout)
    words_ref: (TB, L*Dout)  lane-dense per-word output
    q_ref:     (TB, H)       mean-pooled question embedding
    """
    tb, L, din = x_ref.shape
    hid = w1_ref.shape[1]
    dout = w2_ref.shape[1]

    x = x_ref[...]
    lens = len_ref[...]                                   # (TB, 1) int32
    w1 = w1_ref[...]
    w2 = w2_ref[...]
    b1 = b1_ref[...].astype(jnp.float32)
    b2 = b2_ref[...].astype(jnp.float32)

    # Node-validity mask built in-kernel from lengths (no mask DMA stream).
    pos = jax.lax.broadcasted_iota(jnp.int32, (tb, L), 1)
    mask = (pos < lens).astype(jnp.float32)[:, :, None]   # (TB, L, 1)

    # Per-question aggregation  out[b,i,:] = sum_j a[b,i,j] * f[b,j,:].
    # Tiny L: unrolled VPU broadcast-FMA (frees the MXU, avoids TB tiny K=L
    # matmuls). Larger L: batched MXU matmul.
    use_vpu_agg = L <= 16
    if use_vpu_agg:
        # Single up-cast; all elementwise math stays f32 (v5e has no bf16 VPU).
        a = a_ref[...].astype(jnp.float32)
    else:
        a = a_ref[...]

    def aggregate(feats):                                 # feats: (TB, L, F) f32
        if use_vpu_agg:
            out = a[:, :, 0:1] * feats[:, 0:1, :]
            for j in range(1, L):
                out = out + a[:, :, j:j + 1] * feats[:, j:j + 1, :]
            return out
        return jnp.einsum("bij,bjf->bif", a, feats.astype(a.dtype),
                          preferred_element_type=jnp.float32)

    # ---- Layer 1: tile-wide feature transform on the MXU.
    # L is padded to a multiple of 8 by the wrapper, so (TB, L, D) <-> (TB*L, D)
    # collapses are layout no-ops (sublane tiling = 8).
    xw = jnp.dot(x.reshape(tb * L, din), w1,
                 preferred_element_type=jnp.float32).reshape(tb, L, hid)
    h1 = jnp.maximum(aggregate(xw) + b1, 0.0) * mask      # (TB, L, H) f32

    # ---- Layer 2 (h1 is cast only as an MXU operand; elementwise stays f32).
    h1w = jnp.dot(h1.reshape(tb * L, hid).astype(w2.dtype), w2,
                  preferred_element_type=jnp.float32).reshape(tb, L, dout)
    h2 = jnp.maximum(aggregate(h1w) + b2, 0.0) * mask     # (TB, L, Dout) f32

    # Lane-dense word output: the HBM writeback is a (TB, L*Dout) block, full
    # 128-lane stores even when Dout < 128 (wrapper reshapes back for free).
    words_ref[...] = h2.reshape(tb, L * dout).astype(words_ref.dtype)

    # Question embedding: sum over valid nodes, then one scale (not L scales).
    inv_n = 1.0 / jnp.clip(lens, 1, L).astype(jnp.float32)            # (TB, 1)
    q_ref[...] = (jnp.sum(h1, axis=1) * inv_n).astype(q_ref.dtype)    # (TB, H)


def _round_up(v, m):
    return ((v + m - 1) // m) * m


def _vmem_peak_bytes(tile_b, lp, din, hid, dout, in_bytes, out_bytes):
    """Rough VMEM high-water mark for one grid step."""
    streamed = tile_b * (lp * lp * in_bytes          # adjacency block
                         + lp * din * in_bytes       # embedding block
                         + 4                         # lengths (int32)
                         + lp * dout * out_bytes     # words output block
                         + hid * out_bytes)          # question output block
    weights = (din * hid + hid * dout) * in_bytes + (hid + dout) * 4
    inter = tile_b * lp * (2 * hid + 3 * dout) * 4   # xw/h1, h1w/h2, flat h2 (f32)
    return 2 * streamed + weights + inter            # streams are double-buffered


def _choose_tile_b(batch, lp, din, hid, dout, in_bytes, out_bytes,
                   budget_bytes=32 << 20, max_tile=256):
    """Largest batch tile (multiple of 8, <= 256) whose working set fits the
    VMEM budget, then shrunk so the grid keeps >= 2 steps (both v7x TCs busy)
    and the batch padding stays minimal."""
    tb = max_tile
    while tb > 8 and _vmem_peak_bytes(tb, lp, din, hid, dout,
                                      in_bytes, out_bytes) > budget_bytes:
        tb -= 8
    steps = -(-batch // tb)
    if batch > 8:
        steps = max(steps, 2)
    tb = min(tb, _round_up(-(-batch // steps), 8))
    return max(8, tb)


def gcn_question_forward(adj_norm, x, lengths, w1, b1, w2, b2,
                         *, param_dtype=jnp.bfloat16, tile_b=None):
    """Runs the Pallas kernel over the batch.

    adj_norm: (B, L, L) normalized adjacency
    x:        (B, L, Din) word embeddings (padded rows zero)
    lengths:  (B,) int32 number of valid words per question (assumed <= L)
    param_dtype: dtype for the HBM streams (adjacency / embeddings / weights).
                 Default bf16 halves the dominant bandwidth-bound streams;
                 accumulation and elementwise math stay f32. Pass jnp.float32
                 (or None) for the exact f32 path.
    Returns: words (B, L, Dout), question (B, H) in x's dtype.
    """
    B, L, din = x.shape
    hid = w1.shape[1]
    dout = w2.shape[1]
    out_dtype = x.dtype

    # Pad max length to a multiple of 8 so in-kernel (TB, L, D) <-> (TB*L, D)
    # collapses are layout no-ops. Padded rows are zero / masked out.
    lp = max(8, _round_up(L, 8))
    if lp != L:
        adj_norm = jnp.pad(adj_norm, ((0, 0), (0, lp - L), (0, lp - L)))
        x = jnp.pad(x, ((0, 0), (0, lp - L), (0, 0)))

    in_bytes = jnp.dtype(param_dtype if param_dtype is not None else x.dtype).itemsize
    out_bytes = jnp.dtype(out_dtype).itemsize

    if tile_b is None:
        tile_b = _choose_tile_b(B, lp, din, hid, dout, in_bytes, out_bytes)
    assert tile_b % 8 == 0, "tile_b must be a multiple of 8 (TPU sublane tiling)"

    # Pad batch to the tile (padded questions: zero adjacency/features, length 0).
    bp = _round_up(B, tile_b)
    if bp != B:
        adj_norm = jnp.pad(adj_norm, ((0, bp - B), (0, 0), (0, 0)))
        x = jnp.pad(x, ((0, bp - B), (0, 0), (0, 0)))
        lengths = jnp.pad(lengths, ((0, bp - B),))
    lens2 = lengths.astype(jnp.int32).reshape(bp, 1)

    if param_dtype is not None:
        adj_norm = adj_norm.astype(param_dtype)
        x = x.astype(param_dtype)
        w1 = w1.astype(param_dtype)
        w2 = w2.astype(param_dtype)
    b1 = b1.astype(jnp.float32).reshape(1, hid)
    b2 = b2.astype(jnp.float32).reshape(1, dout)

    grid = (bp // tile_b,)

    # Double-buffered streamed blocks + weights + f32 intermediates + 25% slack,
    # capped at 48 MiB (safe under v7x's 64 MiB physical VMEM, well under
    # v5e/v6e's 128 MiB).
    peak = _vmem_peak_bytes(tile_b, lp, din, hid, dout, in_bytes, out_bytes)
    vmem_limit = int(min(max(int(1.25 * peak), 16 << 20), 48 << 20))

    words_flat, q = pl.pallas_call(
        gcn_question_kernel,
        out_shape=(
            jax.ShapeDtypeStruct((bp, lp * dout), out_dtype),
            jax.ShapeDtypeStruct((bp, hid), out_dtype),
        ),
        grid=grid,
        in_specs=[
            pl.BlockSpec((tile_b, lp, lp), lambda b: (b, 0, 0)),
            pl.BlockSpec((tile_b, lp, din), lambda b: (b, 0, 0)),
            pl.BlockSpec((tile_b, 1), lambda b: (b, 0)),
            pl.BlockSpec((din, hid), lambda b: (0, 0)),
            pl.BlockSpec((1, hid), lambda b: (0, 0)),
            pl.BlockSpec((hid, dout), lambda b: (0, 0)),
            pl.BlockSpec((1, dout), lambda b: (0, 0)),
        ],
        out_specs=(
            pl.BlockSpec((tile_b, lp * dout), lambda b: (b, 0)),
            pl.BlockSpec((tile_b, hid), lambda b: (b, 0)),
        ),
        compiler_params=pltpu.CompilerParams(
            dimension_semantics=("parallel",),   # batch tiles; splits across v7x TCs
            vmem_limit_bytes=vmem_limit,
        ),
    )(adj_norm, x, lens2, w1, b1, w2, b2)

    words = words_flat.reshape(bp, lp, dout)[:B, :L]
    return words, q[:B]


def normalize_adjacency(adj, mask):
    """Symmetric GCN normalization D^-1/2 (A + I) D^-1/2, restricted to valid nodes."""
    B, L, _ = adj.shape
    m2 = mask[:, :, None] * mask[:, None, :]
    a = adj * m2
    a = a + jnp.eye(L, dtype=adj.dtype)[None] * mask[:, :, None]
    deg = jnp.sum(a, axis=-1)
    dinv = jnp.where(deg > 0, 1.0 / jnp.sqrt(jnp.maximum(deg, 1e-12)), 0.0)
    return a * dinv[:, :, None] * dinv[:, None, :]


def reference_forward(adj_norm, x, mask, w1, b1, w2, b2):
    """Pure-JAX reference for correctness checking."""
    m = mask[..., None]
    h1 = jnp.maximum(jnp.einsum("bij,bjk->bik", adj_norm, x @ w1) + b1, 0.0) * m
    h2 = jnp.maximum(jnp.einsum("bij,bjk->bik", adj_norm, h1 @ w2) + b2, 0.0) * m
    n = jnp.maximum(jnp.sum(m, axis=1), 1.0)
    q = jnp.sum(h1, axis=1) / n
    return h2, q


if __name__ == "__main__":
    key = jax.random.PRNGKey(0)

    # ---------- Test 1: tiny question graphs (VPU aggregation path) ----------
    B, L, DIN, HID, DOUT = 2, 8, 32, 32, 32
    k_x, k_w1, k_b1, k_w2, k_b2 = jax.random.split(key, 5)

    lengths = jnp.array([L, 5], dtype=jnp.int32)
    mask = (jnp.arange(L)[None, :] < lengths[:, None]).astype(jnp.float32)

    x = jax.random.normal(k_x, (B, L, DIN), dtype=jnp.float32) * mask[..., None]

    idx = jnp.arange(L)
    chain = ((idx[:, None] + 1) == idx[None, :]).astype(jnp.float32)
    adj = jnp.tile((chain + chain.T)[None], (B, 1, 1))
    extra_src = jnp.array([0, 0], dtype=jnp.int32)
    extra_dst = jnp.array([4, 3], dtype=jnp.int32)
    adj = adj.at[jnp.arange(B), extra_src, extra_dst].set(1.0)
    adj = adj.at[jnp.arange(B), extra_dst, extra_src].set(1.0)
    adj_norm = normalize_adjacency(adj, mask)

    w1 = jax.random.normal(k_w1, (DIN, HID), jnp.float32) * (1.0 / jnp.sqrt(DIN))
    b1 = jax.random.normal(k_b1, (1, HID), jnp.float32) * 0.01
    w2 = jax.random.normal(k_w2, (HID, DOUT), jnp.float32) * (1.0 / jnp.sqrt(HID))
    b2 = jax.random.normal(k_b2, (1, DOUT), jnp.float32) * 0.01

    words_ref1, q_ref1 = reference_forward(adj_norm, x, mask, w1, b1, w2, b2)

    # Exact f32 streams: tight tolerance.
    words, question = gcn_question_forward(adj_norm, x, lengths, w1, b1, w2, b2,
                                           param_dtype=jnp.float32)
    words = jax.block_until_ready(words)
    question = jax.block_until_ready(question)
    assert words.shape == (B, L, DOUT) and question.shape == (B, HID)
    assert jnp.allclose(words, words_ref1, atol=1e-5, rtol=1e-5)
    assert jnp.allclose(question, q_ref1, atol=1e-5, rtol=1e-5)

    # Default bf16 HBM streams (f32 accumulation): looser tolerance.
    words_bf, q_bf = gcn_question_forward(adj_norm, x, lengths, w1, b1, w2, b2)
    words_bf = jax.block_until_ready(words_bf)
    q_bf = jax.block_until_ready(q_bf)
    assert jnp.allclose(words_bf, words_ref1, atol=1e-1, rtol=1e-1)
    assert jnp.allclose(q_bf, q_ref1, atol=1e-1, rtol=1e-1)

    # ---------- Test 2: longer questions (MXU aggregation path, L padded to a
    #            multiple of 8, multi-step grid with batch padding) ----------
    B2, L2, DIN2, HID2, DOUT2 = 12, 21, 64, 48, 64
    k_x2, k_w12, k_b12, k_w22, k_b22, k_a2 = jax.random.split(jax.random.PRNGKey(1), 6)

    lengths2 = jnp.minimum(3 + 2 * jnp.arange(B2, dtype=jnp.int32), L2)
    mask2 = (jnp.arange(L2)[None, :] < lengths2[:, None]).astype(jnp.float32)

    x2 = jax.random.normal(k_x2, (B2, L2, DIN2), jnp.float32) * mask2[..., None]
    raw = (jax.random.uniform(k_a2, (B2, L2, L2)) < 0.15).astype(jnp.float32)
    adj2 = jnp.clip(raw + raw.transpose(0, 2, 1), 0.0, 1.0)
    adj2_norm = normalize_adjacency(adj2, mask2)

    w1b = jax.random.normal(k_w12, (DIN2, HID2), jnp.float32) * (1.0 / jnp.sqrt(DIN2))
    b1b = jax.random.normal(k_b12, (1, HID2), jnp.float32) * 0.01
    w2b = jax.random.normal(k_w22, (HID2, DOUT2), jnp.float32) * (1.0 / jnp.sqrt(HID2))
    b2b = jax.random.normal(k_b22, (1, DOUT2), jnp.float32) * 0.01

    words2, question2 = gcn_question_forward(adj2_norm, x2, lengths2,
                                             w1b, b1b, w2b, b2b,
                                             param_dtype=jnp.float32)
    words2 = jax.block_until_ready(words2)
    question2 = jax.block_until_ready(question2)
    words2_ref, q2_ref = reference_forward(adj2_norm, x2, mask2, w1b, b1b, w2b, b2b)
    assert words2.shape == (B2, L2, DOUT2) and question2.shape == (B2, HID2)
    assert jnp.allclose(words2, words2_ref, atol=1e-4, rtol=1e-4)
    assert jnp.allclose(question2, q2_ref, atol=1e-4, rtol=1e-4)

    # TODO(synk): torch_geometric's pack/pad round-trip truncates to the dynamic
    # max question length; with static JAX shapes we keep the padded L and zero
    # the padded positions instead.
    print("KERNEL_OK")
</pallas_src>

<mosaic_0001>
module attributes {stable_mosaic.version = 11 : i64} {
  func.func @gcn_question_kernel(%arg0: i32, %arg1: memref<8x8x8xf32, #tpu.memory_space<vmem>>, %arg2: memref<8x8x32xf32, #tpu.memory_space<vmem>>, %arg3: memref<8x1xi32, #tpu.memory_space<vmem>>, %arg4: memref<32x32xf32, #tpu.memory_space<vmem>>, %arg5: memref<1x32xf32, #tpu.memory_space<vmem>>, %arg6: memref<32x32xf32, #tpu.memory_space<vmem>>, %arg7: memref<1x32xf32, #tpu.memory_space<vmem>>, %arg8: memref<8x256xf32, #tpu.memory_space<vmem>>, %arg9: memref<8x32xf32, #tpu.memory_space<vmem>>) attributes {dimension_semantics = [#tpu.dimension_semantics<parallel>], iteration_bounds = array<i64: 1>, scalar_prefetch = 0 : i64, scratch_operands = 0 : i64, tpu.core_type = #tpu.core_type<tc>, window_params = [{transform_indices = @transform_0, window_bounds = array<i64: 8, 8, 8>}, {transform_indices = @transform_1, window_bounds = array<i64: 8, 8, 32>}, {transform_indices = @transform_2, window_bounds = array<i64: 8, 1>}, {pipeline_mode = #tpu.pipeline_mode<synchronous>, transform_indices = @transform_3, window_bounds = array<i64: 32, 32>}, {pipeline_mode = #tpu.pipeline_mode<synchronous>, transform_indices = @transform_4, window_bounds = array<i64: 1, 32>}, {pipeline_mode = #tpu.pipeline_mode<synchronous>, transform_indices = @transform_5, window_bounds = array<i64: 32, 32>}, {pipeline_mode = #tpu.pipeline_mode<synchronous>, transform_indices = @transform_6, window_bounds = array<i64: 1, 32>}, {transform_indices = @transform_7, window_bounds = array<i64: 8, 256>}, {transform_indices = @transform_8, window_bounds = array<i64: 8, 32>}]} {
    %c0 = arith.constant 0 : index
    %c0_0 = arith.constant 0 : index
    %c0_1 = arith.constant 0 : index
    %0 = vector.load %arg2[%c0, %c0_0, %c0_1] : memref<8x8x32xf32, #tpu.memory_space<vmem>>, vector<8x8x32xf32>
    %c0_2 = arith.constant 0 : index
    %c0_3 = arith.constant 0 : index
    %1 = vector.load %arg3[%c0_2, %c0_3] : memref<8x1xi32, #tpu.memory_space<vmem>>, vector<8x1xi32>
    %c0_4 = arith.constant 0 : index
    %c0_5 = arith.constant 0 : index
    %2 = vector.load %arg4[%c0_4, %c0_5] : memref<32x32xf32, #tpu.memory_space<vmem>>, vector<32x32xf32>
    %c0_6 = arith.constant 0 : index
    %c0_7 = arith.constant 0 : index
    %3 = vector.load %arg6[%c0_6, %c0_7] : memref<32x32xf32, #tpu.memory_space<vmem>>, vector<32x32xf32>
    %c0_8 = arith.constant 0 : index
    %c0_9 = arith.constant 0 : index
    %4 = vector.load %arg5[%c0_8, %c0_9] : memref<1x32xf32, #tpu.memory_space<vmem>>, vector<1x32xf32>
    %c0_10 = arith.constant 0 : index
    %c0_11 = arith.constant 0 : index
    %5 = vector.load %arg7[%c0_10, %c0_11] : memref<1x32xf32, #tpu.memory_space<vmem>>, vector<1x32xf32>
    %6 = tpu.iota {dimensions = array<i32: 1>} : vector<8x8xi32>
    %7 = vector.broadcast %1 : vector<8x1xi32> to vector<8x8xi32>
    %8 = arith.cmpi slt, %6, %7 : vector<8x8xi32>
    %9 = arith.extui %8 : vector<8x8xi1> to vector<8x8xi32>
    %10 = arith.sitofp %9 : vector<8x8xi32> to vector<8x8xf32>
    %11 = vector.shape_cast %10 : vector<8x8xf32> to vector<8x8x1xf32>
    %c0_12 = arith.constant 0 : index
    %c0_13 = arith.constant 0 : index
    %c0_14 = arith.constant 0 : index
    %12 = vector.load %arg1[%c0_12, %c0_13, %c0_14] : memref<8x8x8xf32, #tpu.memory_space<vmem>>, vector<8x8x8xf32>
    %13 = vector.shape_cast %0 : vector<8x8x32xf32> to vector<64x32xf32>
    %cst = arith.constant dense<0.000000e+00> : vector<64x32xf32>
    %14 = tpu.matmul %13, %2, %cst {dimension_numbers = #tpu.dot_dimension_numbers<[1], [0], [0], [1], [0, 0, 1, 1], [], []>} : vector<64x32xf32>, vector<32x32xf32>, vector<64x32xf32> -> vector<64x32xf32>
    %15 = vector.shape_cast %14 : vector<64x32xf32> to vector<8x8x32xf32>
    %16 = vector.extract_strided_slice %12 {offsets = [0, 0, 0], sizes = [8, 8, 1], strides = [1, 1, 1]} : vector<8x8x8xf32> to vector<8x8x1xf32>
    %17 = vector.extract_strided_slice %15 {offsets = [0, 0, 0], sizes = [8, 1, 32], strides = [1, 1, 1]} : vector<8x8x32xf32> to vector<8x1x32xf32>
    %18 = vector.broadcast %16 : vector<8x8x1xf32> to vector<8x8x32xf32>
    %19 = vector.broadcast %17 : vector<8x1x32xf32> to vector<8x8x32xf32>
    %20 = arith.mulf %18, %19 : vector<8x8x32xf32>
    %21 = vector.extract_strided_slice %12 {offsets = [0, 0, 1], sizes = [8, 8, 1], strides = [1, 1, 1]} : vector<8x8x8xf32> to vector<8x8x1xf32>
    %22 = vector.extract_strided_slice %15 {offsets = [0, 1, 0], sizes = [8, 1, 32], strides = [1, 1, 1]} : vector<8x8x32xf32> to vector<8x1x32xf32>
    %23 = vector.broadcast %21 : vector<8x8x1xf32> to vector<8x8x32xf32>
    %24 = vector.broadcast %22 : vector<8x1x32xf32> to vector<8x8x32xf32>
    %25 = arith.mulf %23, %24 : vector<8x8x32xf32>
    %26 = arith.addf %20, %25 : vector<8x8x32xf32>
    %27 = vector.extract_strided_slice %12 {offsets = [0, 0, 2], sizes = [8, 8, 1], strides = [1, 1, 1]} : vector<8x8x8xf32> to vector<8x8x1xf32>
    %28 = vector.extract_strided_slice %15 {offsets = [0, 2, 0], sizes = [8, 1, 32], strides = [1, 1, 1]} : vector<8x8x32xf32> to vector<8x1x32xf32>
    %29 = vector.broadcast %27 : vector<8x8x1xf32> to vector<8x8x32xf32>
    %30 = vector.broadcast %28 : vector<8x1x32xf32> to vector<8x8x32xf32>
    %31 = arith.mulf %29, %30 : vector<8x8x32xf32>
    %32 = arith.addf %26, %31 : vector<8x8x32xf32>
    %33 = vector.extract_strided_slice %12 {offsets = [0, 0, 3], sizes = [8, 8, 1], strides = [1, 1, 1]} : vector<8x8x8xf32> to vector<8x8x1xf32>
    %34 = vector.extract_strided_slice %15 {offsets = [0, 3, 0], sizes = [8, 1, 32], strides = [1, 1, 1]} : vector<8x8x32xf32> to vector<8x1x32xf32>
    %35 = vector.broadcast %33 : vector<8x8x1xf32> to vector<8x8x32xf32>
    %36 = vector.broadcast %34 : vector<8x1x32xf32> to vector<8x8x32xf32>
    %37 = arith.mulf %35, %36 : vector<8x8x32xf32>
    %38 = arith.addf %32, %37 : vector<8x8x32xf32>
    %39 = vector.extract_strided_slice %12 {offsets = [0, 0, 4], sizes = [8, 8, 1], strides = [1, 1, 1]} : vector<8x8x8xf32> to vector<8x8x1xf32>
    %40 = vector.extract_strided_slice %15 {offsets = [0, 4, 0], sizes = [8, 1, 32], strides = [1, 1, 1]} : vector<8x8x32xf32> to vector<8x1x32xf32>
    %41 = vector.broadcast %39 : vector<8x8x1xf32> to vector<8x8x32xf32>
    %42 = vector.broadcast %40 : vector<8x1x32xf32> to vector<8x8x32xf32>
    %43 = arith.mulf %41, %42 : vector<8x8x32xf32>
    %44 = arith.addf %38, %43 : vector<8x8x32xf32>
    %45 = vector.extract_strided_slice %12 {offsets = [0, 0, 5], sizes = [8, 8, 1], strides = [1, 1, 1]} : vector<8x8x8xf32> to vector<8x8x1xf32>
    %46 = vector.extract_strided_slice %15 {offsets = [0, 5, 0], sizes = [8, 1, 32], strides = [1, 1, 1]} : vector<8x8x32xf32> to vector<8x1x32xf32>
    %47 = vector.broadcast %45 : vector<8x8x1xf32> to vector<8x8x32xf32>
    %48 = vector.broadcast %46 : vector<8x1x32xf32> to vector<8x8x32xf32>
    %49 = arith.mulf %47, %48 : vector<8x8x32xf32>
    %50 = arith.addf %44, %49 : vector<8x8x32xf32>
    %51 = vector.extract_strided_slice %12 {offsets = [0, 0, 6], sizes = [8, 8, 1], strides = [1, 1, 1]} : vector<8x8x8xf32> to vector<8x8x1xf32>
    %52 = vector.extract_strided_slice %15 {offsets = [0, 6, 0], sizes = [8, 1, 32], strides = [1, 1, 1]} : vector<8x8x32xf32> to vector<8x1x32xf32>
    %53 = vector.broadcast %51 : vector<8x8x1xf32> to vector<8x8x32xf32>
    %54 = vector.broadcast %52 : vector<8x1x32xf32> to vector<8x8x32xf32>
    %55 = arith.mulf %53, %54 : vector<8x8x32xf32>
    %56 = arith.addf %50, %55 : vector<8x8x32xf32>
    %57 = vector.extract_strided_slice %12 {offsets = [0, 0, 7], sizes = [8, 8, 1], strides = [1, 1, 1]} : vector<8x8x8xf32> to vector<8x8x1xf32>
    %58 = vector.extract_strided_slice %15 {offsets = [0, 7, 0], sizes = [8, 1, 32], strides = [1, 1, 1]} : vector<8x8x32xf32> to vector<8x1x32xf32>
    %59 = vector.broadcast %57 : vector<8x8x1xf32> to vector<8x8x32xf32>
    %60 = vector.broadcast %58 : vector<8x1x32xf32> to vector<8x8x32xf32>
    %61 = arith.mulf %59, %60 : vector<8x8x32xf32>
    %62 = arith.addf %56, %61 : vector<8x8x32xf32>
    %63 = vector.shape_cast %4 : vector<1x32xf32> to vector<1x1x32xf32>
    %64 = vector.broadcast %63 : vector<1x1x32xf32> to vector<8x8x32xf32>
    %65 = arith.addf %62, %64 : vector<8x8x32xf32>
    %cst_15 = arith.constant 0.000000e+00 : f32
    %66 = vector.broadcast %cst_15 : f32 to vector<8x8x32xf32>
    %67 = arith.maximumf %65, %66 : vector<8x8x32xf32>
    %68 = vector.broadcast %11 : vector<8x8x1xf32> to vector<8x8x32xf32>
    %69 = arith.mulf %67, %68 : vector<8x8x32xf32>
    %70 = vector.shape_cast %69 : vector<8x8x32xf32> to vector<64x32xf32>
    %cst_16 = arith.constant dense<0.000000e+00> : vector<64x32xf32>
    %71 = tpu.matmul %70, %3, %cst_16 {dimension_numbers = #tpu.dot_dimension_numbers<[1], [0], [0], [1], [0, 0, 1, 1], [], []>} : vector<64x32xf32>, vector<32x32xf32>, vector<64x32xf32> -> vector<64x32xf32>
    %72 = vector.shape_cast %71 : vector<64x32xf32> to vector<8x8x32xf32>
    %73 = vector.extract_strided_slice %12 {offsets = [0, 0, 0], sizes = [8, 8, 1], strides = [1, 1, 1]} : vector<8x8x8xf32> to vector<8x8x1xf32>
    %74 = vector.extract_strided_slice %72 {offsets = [0, 0, 0], sizes = [8, 1, 32], strides = [1, 1, 1]} : vector<8x8x32xf32> to vector<8x1x32xf32>
    %75 = vector.broadcast %73 : vector<8x8x1xf32> to vector<8x8x32xf32>
    %76 = vector.broadcast %74 : vector<8x1x32xf32> to vector<8x8x32xf32>
    %77 = arith.mulf %75, %76 : vector<8x8x32xf32>
    %78 = vector.extract_strided_slice %12 {offsets = [0, 0, 1], sizes = [8, 8, 1], strides = [1, 1, 1]} : vector<8x8x8xf32> to vector<8x8x1xf32>
    %79 = vector.extract_strided_slice %72 {offsets = [0, 1, 0], sizes = [8, 1, 32], strides = [1, 1, 1]} : vector<8x8x32xf32> to vector<8x1x32xf32>
    %80 = vector.broadcast %78 : vector<8x8x1xf32> to vector<8x8x32xf32>
    %81 = vector.broadcast %79 : vector<8x1x32xf32> to vector<8x8x32xf32>
    %82 = arith.mulf %80, %81 : vector<8x8x32xf32>
    %83 = arith.addf %77, %82 : vector<8x8x32xf32>
    %84 = vector.extract_strided_slice %12 {offsets = [0, 0, 2], sizes = [8, 8, 1], strides = [1, 1, 1]} : vector<8x8x8xf32> to vector<8x8x1xf32>
    %85 = vector.extract_strided_slice %72 {offsets = [0, 2, 0], sizes = [8, 1, 32], strides = [1, 1, 1]} : vector<8x8x32xf32> to vector<8x1x32xf32>
    %86 = vector.broadcast %84 : vector<8x8x1xf32> to vector<8x8x32xf32>
    %87 = vector.broadcast %85 : vector<8x1x32xf32> to vector<8x8x32xf32>
    %88 = arith.mulf %86, %87 : vector<8x8x32xf32>
    %89 = arith.addf %83, %88 : vector<8x8x32xf32>
    %90 = vector.extract_strided_slice %12 {offsets = [0, 0, 3], sizes = [8, 8, 1], strides = [1, 1, 1]} : vector<8x8x8xf32> to vector<8x8x1xf32>
    %91 = vector.extract_strided_slice %72 {offsets = [0, 3, 0], sizes = [8, 1, 32], strides = [1, 1, 1]} : vector<8x8x32xf32> to vector<8x1x32xf32>
    %92 = vector.broadcast %90 : vector<8x8x1xf32> to vector<8x8x32xf32>
    %93 = vector.broadcast %91 : vector<8x1x32xf32> to vector<8x8x32xf32>
    %94 = arith.mulf %92, %93 : vector<8x8x32xf32>
    %95 = arith.addf %89, %94 : vector<8x8x32xf32>
    %96 = vector.extract_strided_slice %12 {offsets = [0, 0, 4], sizes = [8, 8, 1], strides = [1, 1, 1]} : vector<8x8x8xf32> to vector<8x8x1xf32>
    %97 = vector.extract_strided_slice %72 {offsets = [0, 4, 0], sizes = [8, 1, 32], strides = [1, 1, 1]} : vector<8x8x32xf32> to vector<8x1x32xf32>
    %98 = vector.broadcast %96 : vector<8x8x1xf32> to vector<8x8x32xf32>
    %99 = vector.broadcast %97 : vector<8x1x32xf32> to vector<8x8x32xf32>
    %100 = arith.mulf %98, %99 : vector<8x8x32xf32>
    %101 = arith.addf %95, %100 : vector<8x8x32xf32>
    %102 = vector.extract_strided_slice %12 {offsets = [0, 0, 5], sizes = [8, 8, 1], strides = [1, 1, 1]} : vector<8x8x8xf32> to vector<8x8x1xf32>
    %103 = vector.extract_strided_slice %72 {offsets = [0, 5, 0], sizes = [8, 1, 32], strides = [1, 1, 1]} : vector<8x8x32xf32> to vector<8x1x32xf32>
    %104 = vector.broadcast %102 : vector<8x8x1xf32> to vector<8x8x32xf32>
    %105 = vector.broadcast %103 : vector<8x1x32xf32> to vector<8x8x32xf32>
    %106 = arith.mulf %104, %105 : vector<8x8x32xf32>
    %107 = arith.addf %101, %106 : vector<8x8x32xf32>
    %108 = vector.extract_strided_slice %12 {offsets = [0, 0, 6], sizes = [8, 8, 1], strides = [1, 1, 1]} : vector<8x8x8xf32> to vector<8x8x1xf32>
    %109 = vector.extract_strided_slice %72 {offsets = [0, 6, 0], sizes = [8, 1, 32], strides = [1, 1, 1]} : vector<8x8x32xf32> to vector<8x1x32xf32>
    %110 = vector.broadcast %108 : vector<8x8x1xf32> to vector<8x8x32xf32>
    %111 = vector.broadcast %109 : vector<8x1x32xf32> to vector<8x8x32xf32>
    %112 = arith.mulf %110, %111 : vector<8x8x32xf32>
    %113 = arith.addf %107, %112 : vector<8x8x32xf32>
    %114 = vector.extract_strided_slice %12 {offsets = [0, 0, 7], sizes = [8, 8, 1], strides = [1, 1, 1]} : vector<8x8x8xf32> to vector<8x8x1xf32>
    %115 = vector.extract_strided_slice %72 {offsets = [0, 7, 0], sizes = [8, 1, 32], strides = [1, 1, 1]} : vector<8x8x32xf32> to vector<8x1x32xf32>
    %116 = vector.broadcast %114 : vector<8x8x1xf32> to vector<8x8x32xf32>
    %117 = vector.broadcast %115 : vector<8x1x32xf32> to vector<8x8x32xf32>
    %118 = arith.mulf %116, %117 : vector<8x8x32xf32>
    %119 = arith.addf %113, %118 : vector<8x8x32xf32>
    %120 = vector.shape_cast %5 : vector<1x32xf32> to vector<1x1x32xf32>
    %121 = vector.broadcast %120 : vector<1x1x32xf32> to vector<8x8x32xf32>
    %122 = arith.addf %119, %121 : vector<8x8x32xf32>
    %cst_17 = arith.constant 0.000000e+00 : f32
    %123 = vector.broadcast %cst_17 : f32 to vector<8x8x32xf32>
    %124 = arith.maximumf %122, %123 : vector<8x8x32xf32>
    %125 = vector.broadcast %11 : vector<8x8x1xf32> to vector<8x8x32xf32>
    %126 = arith.mulf %124, %125 : vector<8x8x32xf32>
    %127 = vector.shape_cast %126 : vector<8x8x32xf32> to vector<8x256xf32>
    %c0_18 = arith.constant 0 : index
    %c0_19 = arith.constant 0 : index
    %128 = vector.load %arg8[%c0_18, %c0_19] : memref<8x256xf32, #tpu.memory_space<vmem>>, vector<8x256xf32>
    tpu.vector_store %arg8[%c0_18, %c0_19], %127 {strides = array<i32>} : memref<8x256xf32, #tpu.memory_space<vmem>>, vector<8x256xf32>,
    %c1_i32 = arith.constant 1 : i32
    %c8_i32 = arith.constant 8 : i32
    %129 = vector.broadcast %c1_i32 : i32 to vector<8x1xi32>
    %130 = arith.maxsi %129, %1 : vector<8x1xi32>
    %131 = vector.broadcast %c8_i32 : i32 to vector<8x1xi32>
    %132 = arith.minsi %131, %130 : vector<8x1xi32>
    %133 = arith.sitofp %132 : vector<8x1xi32> to vector<8x1xf32>
    %cst_20 = arith.constant 1.000000e+00 : f32
    %134 = vector.broadcast %cst_20 : f32 to vector<8x1xf32>
    %135 = arith.divf %134, %133 : vector<8x1xf32>
    %cst_21 = arith.constant dense<0.000000e+00> : vector<8x32xf32>
    %136 = vector.multi_reduction <add>, %69, %cst_21 [1] : vector<8x8x32xf32> to vector<8x32xf32>
    %137 = vector.broadcast %135 : vector<8x1xf32> to vector<8x32xf32>
    %138 = arith.mulf %136, %137 : vector<8x32xf32>
    %c0_22 = arith.constant 0 : index
    %c0_23 = arith.constant 0 : index
    %139 = vector.load %arg9[%c0_22, %c0_23] : memref<8x32xf32, #tpu.memory_space<vmem>>, vector<8x32xf32>
    tpu.vector_store %arg9[%c0_22, %c0_23], %138 {strides = array<i32>} : memref<8x32xf32, #tpu.memory_space<vmem>>, vector<8x32xf32>,
    return
  }
  func.func @transform_0(%arg0: i32) -> (i32, i32, i32) {
    %c0_i32 = arith.constant 0 : i32
    %c0_i32_0 = arith.constant 0 : i32
    %c0_i32_1 = arith.constant 0 : i32
    return %arg0, %c0_i32, %c0_i32_0 : i32, i32, i32
  }
  func.func @transform_1(%arg0: i32) -> (i32, i32, i32) {
    %c0_i32 = arith.constant 0 : i32
    %c0_i32_0 = arith.constant 0 : i32
    %c0_i32_1 = arith.constant 0 : i32
    return %arg0, %c0_i32, %c0_i32_0 : i32, i32, i32
  }
  func.func @transform_2(%arg0: i32) -> (i32, i32) {
    %c0_i32 = arith.constant 0 : i32
    %c0_i32_0 = arith.constant 0 : i32
    return %arg0, %c0_i32 : i32, i32
  }
  func.func @transform_3(%arg0: i32) -> (i32, i32) {
    %c0_i32 = arith.constant 0 : i32
    %c0_i32_0 = arith.constant 0 : i32
    %c0_i32_1 = arith.constant 0 : i32
    return %c0_i32, %c0_i32_0 : i32, i32
  }
  func.func @transform_4(%arg0: i32) -> (i32, i32) {
    %c0_i32 = arith.constant 0 : i32
    %c0_i32_0 = arith.constant 0 : i32
    %c0_i32_1 = arith.constant 0 : i32
    return %c0_i32, %c0_i32_0 : i32, i32
  }
  func.func @transform_5(%arg0: i32) -> (i32, i32) {
    %c0_i32 = arith.constant 0 : i32
    %c0_i32_0 = arith.constant 0 : i32
    %c0_i32_1 = arith.constant 0 : i32
    return %c0_i32, %c0_i32_0 : i32, i32
  }
  func.func @transform_6(%arg0: i32) -> (i32, i32) {
    %c0_i32 = arith.constant 0 : i32
    %c0_i32_0 = arith.constant 0 : i32
    %c0_i32_1 = arith.constant 0 : i32
    return %c0_i32, %c0_i32_0 : i32, i32
  }
  func.func @transform_7(%arg0: i32) -> (i32, i32) {
    %c0_i32 = arith.constant 0 : i32
    %c0_i32_0 = arith.constant 0 : i32
    return %arg0, %c0_i32 : i32, i32
  }
  func.func @transform_8(%arg0: i32) -> (i32, i32) {
    %c0_i32 = arith.constant 0 : i32
    %c0_i32_0 = arith.constant 0 : i32
    return %arg0, %c0_i32 : i32, i32
  }
}

</mosaic_0001>

<llo_original>
// kernel: tpu_custom_call.1
$region0: #{tpu_custom_call.1}
  #allocation0 [shape = 'u32[]', space=smem, size = 0x4, offset = 0x4, fixed_abs, tag = 'smem constant byte address 0x4 - core index']
  #allocation1 [shape = 'u32[144,128]{1,0:T(1,128)}', space=vmem, size = 0x12000, scoped, tag = 'internal scratch']
  %s0 = inlined_call_operand.hbm [shape: f32[8,8,8], index: 0, kind: input, shape index: {}]
  %s1 = inlined_call_operand.hbm [shape: f32[8,8,32], index: 1, kind: input, shape index: {}]
  %s2 = inlined_call_operand.vmem [shape: s32[8,1], index: 2, kind: input, shape index: {}]
  %s3 = inlined_call_operand.hbm [shape: f32[32,32], index: 3, kind: input, shape index: {}]
  %s4 = inlined_call_operand.vmem [shape: f32[1,32], index: 4, kind: input, shape index: {}]
  %s5 = inlined_call_operand.hbm [shape: f32[32,32], index: 5, kind: input, shape index: {}]
  %s6 = inlined_call_operand.vmem [shape: f32[1,32], index: 6, kind: input, shape index: {}]
  %s7 = inlined_call_operand.hbm [shape: f32[8,256], index: 7, kind: output, shape index: {0}]
  %s8 = inlined_call_operand.hbm [shape: f32[8,32], index: 8, kind: output, shape index: {1}]
  %9 = xla_tuple %s7, %s8
  %s10 = sld [smem:[#allocation0]]
  $region62: #{tpu_custom_call.1} parent=0
    _
  %s12 = ssub.s32 1, %s10
  %s13 = scalar_select 0, %s12, %s10
  $region1: #{tpu_custom_call.1} parent=0
    #allocation2 [shape = 'u8[32768]{0}', space=vmem, size = 0x8000, scoped, tag = 'input window, operand 0, single buffered']
    #allocation3 [shape = 's32[1]{0}', space=sflag, size = 0x4, scoped, tag = 'scoped memory for tpu_custom_call.1']
    #allocation4 [shape = 's32[1]{0}', space=sflag, size = 0x4, scoped, tag = 'scoped memory for tpu_custom_call.1']
    #allocation5 [shape = 'u8[32768]{0}', space=vmem, size = 0x8000, scoped, tag = 'input window, operand 1, single buffered']
    #allocation6 [shape = 's32[1]{0}', space=sflag, size = 0x4, scoped, tag = 'scoped memory for tpu_custom_call.1']
    #allocation7 [shape = 'u8[16384]{0}', space=vmem, size = 0x4000, scoped, tag = 'input window, operand 3, single buffered']
    #allocation8 [shape = 'u8[16384]{0}', space=vmem, size = 0x4000, scoped, tag = 'input window, operand 5, single buffered']
    #allocation9 [shape = 's32[1]{0}', space=sflag, size = 0x4, scoped, tag = 'scoped memory for tpu_custom_call.1']
    #allocation10 [shape = 'u8[8192]{0}', space=vmem, size = 0x2000, scoped, tag = 'output window, operand 0, single buffered']
    #allocation11 [shape = 'u8[4096]{0}', space=vmem, size = 0x1000, scoped, tag = 'output window, operand 1, single buffered']
    #allocation12 [shape = 's32[1]{0}', space=sflag, size = 0x4, scoped, tag = 'scoped memory for tpu_custom_call.1']
    %14 = vsyncpa [#allocation3], 0
    %15 = vsyncpa [#allocation6], 0
    %16 = vsyncpa [#allocation9], 0
    %17 = vsyncpa [#allocation4], 0
    %18 = vsyncpa [#allocation12], 0
    // Predicated region
    $region2: #{tpu_custom_call.1} parent=1 // pred_check
      _
    $region3: #{tpu_custom_call.1} parent=1 // pred_check_branch
      %20 = sbr.rel (0) target = $region5
    $region4: #{tpu_custom_call.1} parent=1 // pred_region
      %s22 = ssub.s32 1024, 1024
      %23 = vsyncadd [#allocation3], %s22
      %s24 = sshll.u32 [#allocation2], 4
      %s25 = int_to_ptr.vmem [resolvable:$true] %s24
      %30 = dma.hbm_to_vmem [thread:$0]  %s0, 1024, %s25, [#allocation3], 128, 128, 8
    $region5: #{tpu_custom_call.1} parent=1 // pred_fallthru
      _
    // Predicated region
    $region6: #{tpu_custom_call.1} parent=1 // pred_check
      _
    $region7: #{tpu_custom_call.1} parent=1 // pred_check_branch
      %32 = sbr.rel (0) target = $region9
    $region8: #{tpu_custom_call.1} parent=1 // pred_region
      %s34 = ssub.s32 1024, 1024
      %35 = vsyncadd [#allocation6], %s34
      %s36 = sshll.u32 [#allocation5], 4
      %s37 = int_to_ptr.vmem [resolvable:$true] %s36
      %42 = dma.hbm_to_vmem [thread:$0]  %s1, 1024, %s37, [#allocation6], 128, 128, 8
    $region9: #{tpu_custom_call.1} parent=1 // pred_fallthru
      _
    // Predicated region
    $region10: #{tpu_custom_call.1} parent=1 // pred_check
      _
    $region11: #{tpu_custom_call.1} parent=1 // pred_check_branch
      %44 = sbr.rel (0) target = $region13
    $region12: #{tpu_custom_call.1} parent=1 // pred_region
      _
    $region13: #{tpu_custom_call.1} parent=1 // pred_fallthru
      _
    // Predicated region
    $region14: #{tpu_custom_call.1} parent=1 // pred_check
      _
    $region15: #{tpu_custom_call.1} parent=1 // pred_check_branch
      %46 = sbr.rel (0) target = $region17
    $region16: #{tpu_custom_call.1} parent=1 // pred_region
      %s48 = ssub.s32 512, 512
      %49 = vsyncadd [#allocation6], %s48
      %s50 = sshll.u32 [#allocation7], 4
      %s51 = int_to_ptr.vmem [resolvable:$true] %s50
      %56 = dma.hbm_to_vmem [thread:$0]  %s3, 512, %s51, [#allocation6], 128, 128, 8
    $region17: #{tpu_custom_call.1} parent=1 // pred_fallthru
      _
    // Predicated region
    $region18: #{tpu_custom_call.1} parent=1 // pred_check
      _
    $region19: #{tpu_custom_call.1} parent=1 // pred_check_branch
      %58 = sbr.rel (0) target = $region21
    $region20: #{tpu_custom_call.1} parent=1 // pred_region
      _
    $region21: #{tpu_custom_call.1} parent=1 // pred_fallthru
      _
    // Predicated region
    $region22: #{tpu_custom_call.1} parent=1 // pred_check
      _
    $region23: #{tpu_custom_call.1} parent=1 // pred_check_branch
      %60 = sbr.rel (0) target = $region25
    $region24: #{tpu_custom_call.1} parent=1 // pred_region
      %s62 = ssub.s32 512, 512
      %63 = vsyncadd [#allocation9], %s62
      %s64 = sshll.u32 [#allocation8], 4
      %s65 = int_to_ptr.vmem [resolvable:$true] %s64
      %70 = dma.hbm_to_vmem [thread:$0]  %s5, 512, %s65, [#allocation9], 128, 128, 8
    $region25: #{tpu_custom_call.1} parent=1 // pred_fallthru
      _
    // Predicated region
    $region26: #{tpu_custom_call.1} parent=1 // pred_check
      _
    $region27: #{tpu_custom_call.1} parent=1 // pred_check_branch
      %72 = sbr.rel (0) target = $region29
    $region28: #{tpu_custom_call.1} parent=1 // pred_region
      _
    $region29: #{tpu_custom_call.1} parent=1 // pred_fallthru
      _
    // Predicated region
    $region30: #{tpu_custom_call.1} parent=1 // pred_check
      _
    $region31: #{tpu_custom_call.1} parent=1 // pred_check_branch
      %74 = sbr.rel (0) target = $region33
    $region32: #{tpu_custom_call.1} parent=1 // pred_region
      %75 = dma.done [#allocation3], 1024
    $region33: #{tpu_custom_call.1} parent=1 // pred_fallthru
      _
    // Predicated region
    $region34: #{tpu_custom_call.1} parent=1 // pred_check
      _
    $region35: #{tpu_custom_call.1} parent=1 // pred_check_branch
      %77 = sbr.rel (0) target = $region37
    $region36: #{tpu_custom_call.1} parent=1 // pred_region
      %78 = dma.done [#allocation6], 1024
    $region37: #{tpu_custom_call.1} parent=1 // pred_fallthru
      _
    // Predicated region
    $region38: #{tpu_custom_call.1} parent=1 // pred_check
      _
    $region39: #{tpu_custom_call.1} parent=1 // pred_check_branch
      %80 = sbr.rel (0) target = $region41
    $region40: #{tpu_custom_call.1} parent=1 // pred_region
      %81 = dma.done [#allocation6], 512
    $region41: #{tpu_custom_call.1} parent=1 // pred_fallthru
      _
    // Predicated region
    $region42: #{tpu_custom_call.1} parent=1 // pred_check
      _
    $region43: #{tpu_custom_call.1} parent=1 // pred_check_branch
      %83 = sbr.rel (0) target = $region45
    $region44: #{tpu_custom_call.1} parent=1 // pred_region
      %84 = dma.done [#allocation9], 512
    $region45: #{tpu_custom_call.1} parent=1 // pred_fallthru
      _
    %v85 = vld [vmem:[#allocation5] sm:$0xff]
    %v86 = vld [vmem:[#allocation5 + $0x8] sm:$0xff]
    %v87 = vld [vmem:[#allocation5 + $0x10] sm:$0xff]
    %v88 = vld [vmem:[#allocation5 + $0x18] sm:$0xff]
    %v89 = vld [vmem:[#allocation5 + $0x20] sm:$0xff]
    %v90 = vld [vmem:[#allocation5 + $0x28] sm:$0xff]
    %v91 = vld [vmem:[#allocation5 + $0x30] sm:$0xff]
    %v92 = vld [vmem:[#allocation5 + $0x38] sm:$0xff]
    %v93 = vld [vmem:[%s2] sm:$0xff]
    %v94 = vld [vmem:[#allocation7] sm:$0xff]
    %v95 = vld [vmem:[#allocation7 + $0x8] sm:$0xff]
    %v96 = vld [vmem:[#allocation7 + $0x10] sm:$0xff]
    %v97 = vld [vmem:[#allocation7 + $0x18] sm:$0xff]
    %v98 = vld [vmem:[#allocation8] sm:$0xff]
    %v99 = vld [vmem:[#allocation8 + $0x8] sm:$0xff]
    %v100 = vld [vmem:[#allocation8 + $0x10] sm:$0xff]
    %v101 = vld [vmem:[#allocation8 + $0x18] sm:$0xff]
    %v102 = vld [vmem:[%s4] sm:$0x1]
    %v103 = vld [vmem:[%s6] sm:$0x1]
    %v104 = vlaneseq
    %v105 = vand.u32 %v104, 127
    %106 = vset.pattern.permute.xlu0 0
    %107 = vperm.xlu0 %106, %v93
    %v108 = vpop.permute.xlu0 %107
    %vm109 = vcmp.lt.s32.totalorder %v105, %v108
    %v110 = vsel %vm109, 1, 0
    %v111 = vcvt.s32.f32 %v110
    %v112 = vlaneseq
    %v113 = vshrl.u32 %v112, 7
    %v114 = vsub.s32 0, %v113
    %v115 = vrot.slane %v111, %v114
    %117 = vbcast.lane.b32.xlu0 %v115, 256
    %v118 = vpop.permute.xlu0 %117
    %v119 = vlaneseq
    %v120 = vshrl.u32 %v119, 7
    %v121 = vsub.s32 1, %v120
    %v122 = vrot.slane %v111, %v121
    %124 = vbcast.lane.b32.xlu0 %v122, 256
    %v125 = vpop.permute.xlu0 %124
    %v126 = vlaneseq
    %v127 = vshrl.u32 %v126, 7
    %v128 = vsub.s32 2, %v127
    %v129 = vrot.slane %v111, %v128
    %131 = vbcast.lane.b32.xlu0 %v129, 256
    %v132 = vpop.permute.xlu0 %131
    %v133 = vlaneseq
    %v134 = vshrl.u32 %v133, 7
    %v135 = vsub.s32 3, %v134
    %v136 = vrot.slane %v111, %v135
    %138 = vbcast.lane.b32.xlu0 %v136, 256
    %v139 = vpop.permute.xlu0 %138
    %v140 = vlaneseq
    %v141 = vshrl.u32 %v140, 7
    %v142 = vsub.s32 4, %v141
    %v143 = vrot.slane %v111, %v142
    %145 = vbcast.lane.b32.xlu0 %v143, 256
    %v146 = vpop.permute.xlu0 %145
    %v147 = vlaneseq
    %v148 = vshrl.u32 %v147, 7
    %v149 = vsub.s32 5, %v148
    %v150 = vrot.slane %v111, %v149
    %152 = vbcast.lane.b32.xlu0 %v150, 256
    %v153 = vpop.permute.xlu0 %152
    %v154 = vlaneseq
    %v155 = vshrl.u32 %v154, 7
    %v156 = vsub.s32 6, %v155
    %v157 = vrot.slane %v111, %v156
    %159 = vbcast.lane.b32.xlu0 %v157, 256
    %v160 = vpop.permute.xlu0 %159
    %v161 = vlaneseq
    %v162 = vshrl.u32 %v161, 7
    %v163 = vsub.s32 7, %v162
    %v164 = vrot.slane %v111, %v163
    %166 = vbcast.lane.b32.xlu0 %v164, 256
    %v167 = vpop.permute.xlu0 %166
    %v168 = vld [vmem:[#allocation2] sm:$0xff]
    %v169 = vld [vmem:[#allocation2 + $0x8] sm:$0xff]
    %v170 = vld [vmem:[#allocation2 + $0x10] sm:$0xff]
    %v171 = vld [vmem:[#allocation2 + $0x18] sm:$0xff]
    %v172 = vld [vmem:[#allocation2 + $0x20] sm:$0xff]
    %v173 = vld [vmem:[#allocation2 + $0x28] sm:$0xff]
    %v174 = vld [vmem:[#allocation2 + $0x30] sm:$0xff]
    %v175 = vld [vmem:[#allocation2 + $0x38] sm:$0xff]
    %vm176 = vcmask 261120
    %v178 = vsel %vm176, %v85, 0
    %v181 = vsel %vm176, %v86, 0
    %v184 = vsel %vm176, %v87, 0
    %v187 = vsel %vm176, %v88, 0
    %v190 = vsel %vm176, %v89, 0
    %v193 = vsel %vm176, %v90, 0
    %v196 = vsel %vm176, %v91, 0
    %v199 = vsel %vm176, %v92, 0
    %201 = vmatprep.subr.mxu0 0.0
    %202 = vmatpush1.msra.mxu0 %v94
    %203 = vmatprep.subr.mxu0 0.0
    %204 = vmatpush1.msra.mxu0 %v95
    %205 = vmatprep.subr.mxu0 0.0
    %206 = vmatpush1.msra.mxu0 %v96
    %207 = vmatprep.subr.mxu0 0.0
    %208 = vmatpush1.msra.mxu0 %v97
    %209 = vmatprep.subr.mxu0 0.0
    %210 = vmatpush1.msra.mxu0 0.0
    %211 = vmatprep.subr.mxu0 0.0
    %212 = vmatpush1.msra.mxu0 0.0
    %213 = vmatprep.subr.mxu0 0.0
    %214 = vmatpush1.msra.mxu0 0.0
    %215 = vmatprep.subr.mxu0 0.0
    %216 = vmatpush1.msra.mxu0 0.0
    %217 = vmatprep.subr.mxu0 0.0
    %218 = vmatpush1.msra.mxu0 0.0
    %219 = vmatprep.subr.mxu0 0.0
    %220 = vmatpush1.msra.mxu0 0.0
    %221 = vmatprep.subr.mxu0 0.0
    %222 = vmatpush1.msra.mxu0 0.0
    %223 = vmatprep.subr.mxu0 0.0
    %224 = vmatpush1.msra.mxu0 0.0
    %225 = vmatprep.subr.mxu0 0.0
    %226 = vmatpush1.msra.mxu0 0.0
    %227 = vmatprep.subr.mxu0 0.0
    %228 = vmatpush1.msra.mxu0 0.0
    %229 = vmatprep.subr.mxu0 0.0
    %230 = vmatpush1.msra.mxu0 0.0
    %231 = vmatprep.subr.mxu0 0.0
    %232 = vmatpush1.msra.mxu0 0.0
    %233 = vmatprep.subr.mxu0 0.0
    %234 = vmatpush1.msra.mxu0 0.0
    %235 = vmatprep.subr.mxu0 0.0
    %236 = vmatpush1.msra.mxu0 0.0
    %237 = vmatprep.subr.mxu0 0.0
    %238 = vmatpush1.msra.mxu0 0.0
    %239 = vmatprep.subr.mxu0 0.0
    %240 = vmatpush1.msra.mxu0 0.0
    %241 = vmatprep.subr.mxu0 0.0
    %242 = vmatpush1.msra.mxu0 0.0
    %243 = vmatprep.subr.mxu0 0.0
    %244 = vmatpush1.msra.mxu0 0.0
    %245 = vmatprep.subr.mxu0 0.0
    %246 = vmatpush1.msra.mxu0 0.0
    %247 = vmatprep.subr.mxu0 0.0
    %248 = vmatpush1.msra.mxu0 0.0
    %249 = vmatprep.subr.mxu0 0.0
    %250 = vmatpush1.msra.mxu0 0.0
    %251 = vmatprep.subr.mxu0 0.0
    %252 = vmatpush1.msra.mxu0 0.0
    %253 = vmatprep.subr.mxu0 0.0
    %254 = vmatpush1.msra.mxu0 0.0
    %255 = vmatprep.subr.mxu0 0.0
    %256 = vmatpush1.msra.mxu0 0.0
    %257 = vmatprep.subr.mxu0 0.0
    %258 = vmatpush1.msra.mxu0 0.0
    %259 = vmatprep.subr.mxu0 0.0
    %260 = vmatpush1.msra.mxu0 0.0
    %261 = vmatprep.subr.mxu0 0.0
    %262 = vmatpush1.msra.mxu0 0.0
    %263 = vmatprep.subr.mxu0 0.0
    %264 = vmatpush1.msra.mxu0 0.0
    %265 = vmatprep.mubr.f32.mxu0 0.0
    %266 = vmatmul.mubr.f32.gmra.mrb[0].mxu0 %v178
    %v267 = vpop.f32.mrb[0].mxu0
    %v268 = vadd.f32 0.0, %v267
    %v269 = vpop.f32.mrb[0].mxu0
    %270 = vmatprep.mubr.f32.mxu0 0.0
    %271 = vmatmul.mubr.f32.gmra.mrb[0].mxu0 %v181
    %v272 = vpop.f32.mrb[0].mxu0
    %v273 = vadd.f32 0.0, %v272
    %v274 = vpop.f32.mrb[0].mxu0
    %275 = vmatprep.mubr.f32.mxu0 0.0
    %276 = vmatmul.mubr.f32.gmra.mrb[0].mxu0 %v184
    %v277 = vpop.f32.mrb[0].mxu0
    %v278 = vadd.f32 0.0, %v277
    %v279 = vpop.f32.mrb[0].mxu0
    %280 = vmatprep.mubr.f32.mxu0 0.0
    %281 = vmatmul.mubr.f32.gmra.mrb[0].mxu0 %v187
    %v282 = vpop.f32.mrb[0].mxu0
    %v283 = vadd.f32 0.0, %v282
    %v284 = vpop.f32.mrb[0].mxu0
    %285 = vmatprep.mubr.f32.mxu0 0.0
    %286 = vmatmul.mubr.f32.gmra.mrb[0].mxu0 %v190
    %v287 = vpop.f32.mrb[0].mxu0
    %v288 = vadd.f32 0.0, %v287
    %v289 = vpop.f32.mrb[0].mxu0
    %290 = vmatprep.mubr.f32.mxu0 0.0
    %291 = vmatmul.mubr.f32.gmra.mrb[0].mxu0 %v193
    %v292 = vpop.f32.mrb[0].mxu0
    %v293 = vadd.f32 0.0, %v292
    %v294 = vpop.f32.mrb[0].mxu0
    %295 = vmatprep.mubr.f32.mxu0 0.0
    %296 = vmatmul.mubr.f32.gmra.mrb[0].mxu0 %v196
    %v297 = vpop.f32.mrb[0].mxu0
    %v298 = vadd.f32 0.0, %v297
    %v299 = vpop.f32.mrb[0].mxu0
    %300 = vmatprep.mubr.f32.mxu0 0.0
    %301 = vmatmul.mubr.f32.gmra.mrb[0].mxu0 %v199
    %v302 = vpop.f32.mrb[0].mxu0
    %v303 = vadd.f32 0.0, %v302
    %v304 = vpop.f32.mrb[0].mxu0
    %305 = vdwg.mxu0
    %307 = vset.pattern.permute.xlu0 0
    %308 = vperm.xlu0 %307, %v168
    %v309 = vpop.permute.xlu0 %308
    %312 = vset.pattern.permute.xlu0 0
    %313 = vperm.xlu0 %312, %v169
    %v314 = vpop.permute.xlu0 %313
    %317 = vset.pattern.permute.xlu0 0
    %318 = vperm.xlu0 %317, %v170
    %v319 = vpop.permute.xlu0 %318
    %322 = vset.pattern.permute.xlu0 0
    %323 = vperm.xlu0 %322, %v171
    %v324 = vpop.permute.xlu0 %323
    %327 = vset.pattern.permute.xlu0 0
    %328 = vperm.xlu0 %327, %v172
    %v329 = vpop.permute.xlu0 %328
    %332 = vset.pattern.permute.xlu0 0
    %333 = vperm.xlu0 %332, %v173
    %v334 = vpop.permute.xlu0 %333
    %337 = vset.pattern.permute.xlu0 0
    %338 = vperm.xlu0 %337, %v174
    %v339 = vpop.permute.xlu0 %338
    %342 = vset.pattern.permute.xlu0 0
    %343 = vperm.xlu0 %342, %v175
    %v344 = vpop.permute.xlu0 %343
    %v346 = vlaneseq
    %v347 = vshrl.u32 %v346, 7
    %v348 = vsub.s32 0, %v347
    %v349 = vrot.slane %v268, %v348
    %v350 = vlaneseq
    %v351 = vshrl.u32 %v350, 7
    %v352 = vsub.s32 0, %v351
    %v353 = vrot.slane %v273, %v352
    %v354 = vlaneseq
    %v355 = vshrl.u32 %v354, 7
    %v356 = vsub.s32 0, %v355
    %v357 = vrot.slane %v278, %v356
    %v358 = vlaneseq
    %v359 = vshrl.u32 %v358, 7
    %v360 = vsub.s32 0, %v359
    %v361 = vrot.slane %v283, %v360
    %v362 = vlaneseq
    %v363 = vshrl.u32 %v362, 7
    %v364 = vsub.s32 0, %v363
    %v365 = vrot.slane %v288, %v364
    %v366 = vlaneseq
    %v367 = vshrl.u32 %v366, 7
    %v368 = vsub.s32 0, %v367
    %v369 = vrot.slane %v293, %v368
    %v370 = vlaneseq
    %v371 = vshrl.u32 %v370, 7
    %v372 = vsub.s32 0, %v371
    %v373 = vrot.slane %v298, %v372
    %v374 = vlaneseq
    %v375 = vshrl.u32 %v374, 7
    %v376 = vsub.s32 0, %v375
    %v377 = vrot.slane %v303, %v376
    %v378 = vmul.f32 %v309, %v349
    %v379 = vmul.f32 %v314, %v353
    %v380 = vmul.f32 %v319, %v357
    %v381 = vmul.f32 %v324, %v361
    %v382 = vmul.f32 %v329, %v365
    %v383 = vmul.f32 %v334, %v369
    %v384 = vmul.f32 %v339, %v373
    %v385 = vmul.f32 %v344, %v377
    %386 = vset.pattern.permute.xlu0 1
    %387 = vperm.xlu0 %386, %v168
    %v388 = vpop.permute.xlu0 %387
    %390 = vset.pattern.permute.xlu0 1
    %391 = vperm.xlu0 %390, %v169
    %v392 = vpop.permute.xlu0 %391
    %394 = vset.pattern.permute.xlu0 1
    %395 = vperm.xlu0 %394, %v170
    %v396 = vpop.permute.xlu0 %395
    %398 = vset.pattern.permute.xlu0 1
    %399 = vperm.xlu0 %398, %v171
    %v400 = vpop.permute.xlu0 %399
    %402 = vset.pattern.permute.xlu0 1
    %403 = vperm.xlu0 %402, %v172
    %v404 = vpop.permute.xlu0 %403
    %406 = vset.pattern.permute.xlu0 1
    %407 = vperm.xlu0 %406, %v173
    %v408 = vpop.permute.xlu0 %407
    %410 = vset.pattern.permute.xlu0 1
    %411 = vperm.xlu0 %410, %v174
    %v412 = vpop.permute.xlu0 %411
    %414 = vset.pattern.permute.xlu0 1
    %415 = vperm.xlu0 %414, %v175
    %v416 = vpop.permute.xlu0 %415
    %v418 = vlaneseq
    %v419 = vshrl.u32 %v418, 7
    %v420 = vsub.s32 1, %v419
    %v421 = vrot.slane %v268, %v420
    %v422 = vlaneseq
    %v423 = vshrl.u32 %v422, 7
    %v424 = vsub.s32 1, %v423
    %v425 = vrot.slane %v273, %v424
    %v426 = vlaneseq
    %v427 = vshrl.u32 %v426, 7
    %v428 = vsub.s32 1, %v427
    %v429 = vrot.slane %v278, %v428
    %v430 = vlaneseq
    %v431 = vshrl.u32 %v430, 7
    %v432 = vsub.s32 1, %v431
    %v433 = vrot.slane %v283, %v432
    %v434 = vlaneseq
    %v435 = vshrl.u32 %v434, 7
    %v436 = vsub.s32 1, %v435
    %v437 = vrot.slane %v288, %v436
    %v438 = vlaneseq
    %v439 = vshrl.u32 %v438, 7
    %v440 = vsub.s32 1, %v439
    %v441 = vrot.slane %v293, %v440
    %v442 = vlaneseq
    %v443 = vshrl.u32 %v442, 7
    %v444 = vsub.s32 1, %v443
    %v445 = vrot.slane %v298, %v444
    %v446 = vlaneseq
    %v447 = vshrl.u32 %v446, 7
    %v448 = vsub.s32 1, %v447
    %v449 = vrot.slane %v303, %v448
    %v450 = vmul.f32 %v388, %v421
    %v451 = vmul.f32 %v392, %v425
    %v452 = vmul.f32 %v396, %v429
    %v453 = vmul.f32 %v400, %v433
    %v454 = vmul.f32 %v404, %v437
    %v455 = vmul.f32 %v408, %v441
    %v456 = vmul.f32 %v412, %v445
    %v457 = vmul.f32 %v416, %v449
    %v458 = vadd.f32 %v378, %v450
    %v459 = vadd.f32 %v379, %v451
    %v460 = vadd.f32 %v380, %v452
    %v461 = vadd.f32 %v381, %v453
    %v462 = vadd.f32 %v382, %v454
    %v463 = vadd.f32 %v383, %v455
    %v464 = vadd.f32 %v384, %v456
    %v465 = vadd.f32 %v385, %v457
    %466 = vset.pattern.permute.xlu0 2
    %467 = vperm.xlu0 %466, %v168
    %v468 = vpop.permute.xlu0 %467
    %470 = vset.pattern.permute.xlu0 2
    %471 = vperm.xlu0 %470, %v169
    %v472 = vpop.permute.xlu0 %471
    %474 = vset.pattern.permute.xlu0 2
    %475 = vperm.xlu0 %474, %v170
    %v476 = vpop.permute.xlu0 %475
    %478 = vset.pattern.permute.xlu0 2
    %479 = vperm.xlu0 %478, %v171
    %v480 = vpop.permute.xlu0 %479
    %482 = vset.pattern.permute.xlu0 2
    %483 = vperm.xlu0 %482, %v172
    %v484 = vpop.permute.xlu0 %483
    %486 = vset.pattern.permute.xlu0 2
    %487 = vperm.xlu0 %486, %v173
    %v488 = vpop.permute.xlu0 %487
    %490 = vset.pattern.permute.xlu0 2
    %491 = vperm.xlu0 %490, %v174
    %v492 = vpop.permute.xlu0 %491
    %494 = vset.pattern.permute.xlu0 2
    %495 = vperm.xlu0 %494, %v175
    %v496 = vpop.permute.xlu0 %495
    %v498 = vlaneseq
    %v499 = vshrl.u32 %v498, 7
    %v500 = vsub.s32 2, %v499
    %v501 = vrot.slane %v268, %v500
    %v502 = vlaneseq
    %v503 = vshrl.u32 %v502, 7
    %v504 = vsub.s32 2, %v503
    %v505 = vrot.slane %v273, %v504
    %v506 = vlaneseq
    %v507 = vshrl.u32 %v506, 7
    %v508 = vsub.s32 2, %v507
    %v509 = vrot.slane %v278, %v508
    %v510 = vlaneseq
    %v511 = vshrl.u32 %v510, 7
    %v512 = vsub.s32 2, %v511
    %v513 = vrot.slane %v283, %v512
    %v514 = vlaneseq
    %v515 = vshrl.u32 %v514, 7
    %v516 = vsub.s32 2, %v515
    %v517 = vrot.slane %v288, %v516
    %v518 = vlaneseq
    %v519 = vshrl.u32 %v518, 7
    %v520 = vsub.s32 2, %v519
    %v521 = vrot.slane %v293, %v520
    %v522 = vlaneseq
    %v523 = vshrl.u32 %v522, 7
    %v524 = vsub.s32 2, %v523
    %v525 = vrot.slane %v298, %v524
    %v526 = vlaneseq
    %v527 = vshrl.u32 %v526, 7
    %v528 = vsub.s32 2, %v527
    %v529 = vrot.slane %v303, %v528
    %v530 = vmul.f32 %v468, %v501
    %v531 = vmul.f32 %v472, %v505
    %v532 = vmul.f32 %v476, %v509
    %v533 = vmul.f32 %v480, %v513
    %v534 = vmul.f32 %v484, %v517
    %v535 = vmul.f32 %v488, %v521
    %v536 = vmul.f32 %v492, %v525
    %v537 = vmul.f32 %v496, %v529
    %v538 = vadd.f32 %v458, %v530
    %v539 = vadd.f32 %v459, %v531
    %v540 = vadd.f32 %v460, %v532
    %v541 = vadd.f32 %v461, %v533
    %v542 = vadd.f32 %v462, %v534
    %v543 = vadd.f32 %v463, %v535
    %v544 = vadd.f32 %v464, %v536
    %v545 = vadd.f32 %v465, %v537
    %546 = vset.pattern.permute.xlu0 3
    %547 = vperm.xlu0 %546, %v168
    %v548 = vpop.permute.xlu0 %547
    %550 = vset.pattern.permute.xlu0 3
    %551 = vperm.xlu0 %550, %v169
    %v552 = vpop.permute.xlu0 %551
    %554 = vset.pattern.permute.xlu0 3
    %555 = vperm.xlu0 %554, %v170
    %v556 = vpop.permute.xlu0 %555
    %558 = vset.pattern.permute.xlu0 3
    %559 = vperm.xlu0 %558, %v171
    %v560 = vpop.permute.xlu0 %559
    %562 = vset.pattern.permute.xlu0 3
    %563 = vperm.xlu0 %562, %v172
    %v564 = vpop.permute.xlu0 %563
    %566 = vset.pattern.permute.xlu0 3
    %567 = vperm.xlu0 %566, %v173
    %v568 = vpop.permute.xlu0 %567
    %570 = vset.pattern.permute.xlu0 3
    %571 = vperm.xlu0 %570, %v174
    %v572 = vpop.permute.xlu0 %571
    %574 = vset.pattern.permute.xlu0 3
    %575 = vperm.xlu0 %574, %v175
    %v576 = vpop.permute.xlu0 %575
    %v578 = vlaneseq
    %v579 = vshrl.u32 %v578, 7
    %v580 = vsub.s32 3, %v579
    %v581 = vrot.slane %v268, %v580
    %v582 = vlaneseq
    %v583 = vshrl.u32 %v582, 7
    %v584 = vsub.s32 3, %v583
    %v585 = vrot.slane %v273, %v584
    %v586 = vlaneseq
    %v587 = vshrl.u32 %v586, 7
    %v588 = vsub.s32 3, %v587
    %v589 = vrot.slane %v278, %v588
    %v590 = vlaneseq
    %v591 = vshrl.u32 %v590, 7
    %v592 = vsub.s32 3, %v591
    %v593 = vrot.slane %v283, %v592
    %v594 = vlaneseq
    %v595 = vshrl.u32 %v594, 7
    %v596 = vsub.s32 3, %v595
    %v597 = vrot.slane %v288, %v596
    %v598 = vlaneseq
    %v599 = vshrl.u32 %v598, 7
    %v600 = vsub.s32 3, %v599
    %v601 = vrot.slane %v293, %v600
    %v602 = vlaneseq
    %v603 = vshrl.u32 %v602, 7
    %v604 = vsub.s32 3, %v603
    %v605 = vrot.slane %v298, %v604
    %v606 = vlaneseq
    %v607 = vshrl.u32 %v606, 7
    %v608 = vsub.s32 3, %v607
    %v609 = vrot.slane %v303, %v608
    %v610 = vmul.f32 %v548, %v581
    %v611 = vmul.f32 %v552, %v585
    %v612 = vmul.f32 %v556, %v589
    %v613 = vmul.f32 %v560, %v593
    %v614 = vmul.f32 %v564, %v597
    %v615 = vmul.f32 %v568, %v601
    %v616 = vmul.f32 %v572, %v605
    %v617 = vmul.f32 %v576, %v609
    %v618 = vadd.f32 %v538, %v610
    %v619 = vadd.f32 %v539, %v611
    %v620 = vadd.f32 %v540, %v612
    %v621 = vadd.f32 %v541, %v613
    %v622 = vadd.f32 %v542, %v614
    %v623 = vadd.f32 %v543, %v615
    %v624 = vadd.f32 %v544, %v616
    %v625 = vadd.f32 %v545, %v617
    %626 = vset.pattern.permute.xlu0 4
    %627 = vperm.xlu0 %626, %v168
    %v628 = vpop.permute.xlu0 %627
    %630 = vset.pattern.permute.xlu0 4
    %631 = vperm.xlu0 %630, %v169
    %v632 = vpop.permute.xlu0 %631
    %634 = vset.pattern.permute.xlu0 4
    %635 = vperm.xlu0 %634, %v170
    %v636 = vpop.permute.xlu0 %635
    %638 = vset.pattern.permute.xlu0 4
    %639 = vperm.xlu0 %638, %v171
    %v640 = vpop.permute.xlu0 %639
    %642 = vset.pattern.permute.xlu0 4
    %643 = vperm.xlu0 %642, %v172
    %v644 = vpop.permute.xlu0 %643
    %646 = vset.pattern.permute.xlu0 4
    %647 = vperm.xlu0 %646, %v173
    %v648 = vpop.permute.xlu0 %647
    %650 = vset.pattern.permute.xlu0 4
    %651 = vperm.xlu0 %650, %v174
    %v652 = vpop.permute.xlu0 %651
    %654 = vset.pattern.permute.xlu0 4
    %655 = vperm.xlu0 %654, %v175
    %v656 = vpop.permute.xlu0 %655
    %v658 = vlaneseq
    %v659 = vshrl.u32 %v658, 7
    %v660 = vsub.s32 4, %v659
    %v661 = vrot.slane %v268, %v660
    %v662 = vlaneseq
    %v663 = vshrl.u32 %v662, 7
    %v664 = vsub.s32 4, %v663
    %v665 = vrot.slane %v273, %v664
    %v666 = vlaneseq
    %v667 = vshrl.u32 %v666, 7
    %v668 = vsub.s32 4, %v667
    %v669 = vrot.slane %v278, %v668
    %v670 = vlaneseq
    %v671 = vshrl.u32 %v670, 7
    %v672 = vsub.s32 4, %v671
    %v673 = vrot.slane %v283, %v672
    %v674 = vlaneseq
    %v675 = vshrl.u32 %v674, 7
    %v676 = vsub.s32 4, %v675
    %v677 = vrot.slane %v288, %v676
    %v678 = vlaneseq
    %v679 = vshrl.u32 %v678, 7
    %v680 = vsub.s32 4, %v679
    %v681 = vrot.slane %v293, %v680
    %v682 = vlaneseq
    %v683 = vshrl.u32 %v682, 7
    %v684 = vsub.s32 4, %v683
    %v685 = vrot.slane %v298, %v684
    %v686 = vlaneseq
    %v687 = vshrl.u32 %v686, 7
    %v688 = vsub.s32 4, %v687
    %v689 = vrot.slane %v303, %v688
    %v690 = vmul.f32 %v628, %v661
    %v691 = vmul.f32 %v632, %v665
    %v692 = vmul.f32 %v636, %v669
    %v693 = vmul.f32 %v640, %v673
    %v694 = vmul.f32 %v644, %v677
    %v695 = vmul.f32 %v648, %v681
    %v696 = vmul.f32 %v652, %v685
    %v697 = vmul.f32 %v656, %v689
    %v698 = vadd.f32 %v618, %v690
    %v699 = vadd.f32 %v619, %v691
    %v700 = vadd.f32 %v620, %v692
    %v701 = vadd.f32 %v621, %v693
    %v702 = vadd.f32 %v622, %v694
    %v703 = vadd.f32 %v623, %v695
    %v704 = vadd.f32 %v624, %v696
    %v705 = vadd.f32 %v625, %v697
    %706 = vset.pattern.permute.xlu0 5
    %707 = vperm.xlu0 %706, %v168
    %v708 = vpop.permute.xlu0 %707
    %710 = vset.pattern.permute.xlu0 5
    %711 = vperm.xlu0 %710, %v169
    %v712 = vpop.permute.xlu0 %711
    %714 = vset.pattern.permute.xlu0 5
    %715 = vperm.xlu0 %714, %v170
    %v716 = vpop.permute.xlu0 %715
    %718 = vset.pattern.permute.xlu0 5
    %719 = vperm.xlu0 %718, %v171
    %v720 = vpop.permute.xlu0 %719
    %722 = vset.pattern.permute.xlu0 5
    %723 = vperm.xlu0 %722, %v172
    %v724 = vpop.permute.xlu0 %723
    %726 = vset.pattern.permute.xlu0 5
    %727 = vperm.xlu0 %726, %v173
    %v728 = vpop.permute.xlu0 %727
    %730 = vset.pattern.permute.xlu0 5
    %731 = vperm.xlu0 %730, %v174
    %v732 = vpop.permute.xlu0 %731
    %734 = vset.pattern.permute.xlu0 5
    %735 = vperm.xlu0 %734, %v175
    %v736 = vpop.permute.xlu0 %735
    %v738 = vlaneseq
    %v739 = vshrl.u32 %v738, 7
    %v740 = vsub.s32 5, %v739
    %v741 = vrot.slane %v268, %v740
    %v742 = vlaneseq
    %v743 = vshrl.u32 %v742, 7
    %v744 = vsub.s32 5, %v743
    %v745 = vrot.slane %v273, %v744
    %v746 = vlaneseq
    %v747 = vshrl.u32 %v746, 7
    %v748 = vsub.s32 5, %v747
    %v749 = vrot.slane %v278, %v748
    %v750 = vlaneseq
    %v751 = vshrl.u32 %v750, 7
    %v752 = vsub.s32 5, %v751
    %v753 = vrot.slane %v283, %v752
    %v754 = vlaneseq
    %v755 = vshrl.u32 %v754, 7
    %v756 = vsub.s32 5, %v755
    %v757 = vrot.slane %v288, %v756
    %v758 = vlaneseq
    %v759 = vshrl.u32 %v758, 7
    %v760 = vsub.s32 5, %v759
    %v761 = vrot.slane %v293, %v760
    %v762 = vlaneseq
    %v763 = vshrl.u32 %v762, 7
    %v764 = vsub.s32 5, %v763
    %v765 = vrot.slane %v298, %v764
    %v766 = vlaneseq
    %v767 = vshrl.u32 %v766, 7
    %v768 = vsub.s32 5, %v767
    %v769 = vrot.slane %v303, %v768
    %v770 = vmul.f32 %v708, %v741
    %v771 = vmul.f32 %v712, %v745
    %v772 = vmul.f32 %v716, %v749
    %v773 = vmul.f32 %v720, %v753
    %v774 = vmul.f32 %v724, %v757
    %v775 = vmul.f32 %v728, %v761
    %v776 = vmul.f32 %v732, %v765
    %v777 = vmul.f32 %v736, %v769
    %v778 = vadd.f32 %v698, %v770
    %v779 = vadd.f32 %v699, %v771
    %v780 = vadd.f32 %v700, %v772
    %v781 = vadd.f32 %v701, %v773
    %v782 = vadd.f32 %v702, %v774
    %v783 = vadd.f32 %v703, %v775
    %v784 = vadd.f32 %v704, %v776
    %v785 = vadd.f32 %v705, %v777
    %786 = vset.pattern.permute.xlu0 6
    %787 = vperm.xlu0 %786, %v168
    %v788 = vpop.permute.xlu0 %787
    %790 = vset.pattern.permute.xlu0 6
    %791 = vperm.xlu0 %790, %v169
    %v792 = vpop.permute.xlu0 %791
    %794 = vset.pattern.permute.xlu0 6
    %795 = vperm.xlu0 %794, %v170
    %v796 = vpop.permute.xlu0 %795
    %798 = vset.pattern.permute.xlu0 6
    %799 = vperm.xlu0 %798, %v171
    %v800 = vpop.permute.xlu0 %799
    %802 = vset.pattern.permute.xlu0 6
    %803 = vperm.xlu0 %802, %v172
    %v804 = vpop.permute.xlu0 %803
    %806 = vset.pattern.permute.xlu0 6
    %807 = vperm.xlu0 %806, %v173
    %v808 = vpop.permute.xlu0 %807
    %810 = vset.pattern.permute.xlu0 6
    %811 = vperm.xlu0 %810, %v174
    %v812 = vpop.permute.xlu0 %811
    %814 = vset.pattern.permute.xlu0 6
    %815 = vperm.xlu0 %814, %v175
    %v816 = vpop.permute.xlu0 %815
    %v818 = vlaneseq
    %v819 = vshrl.u32 %v818, 7
    %v820 = vsub.s32 6, %v819
    %v821 = vrot.slane %v268, %v820
    %v822 = vlaneseq
    %v823 = vshrl.u32 %v822, 7
    %v824 = vsub.s32 6, %v823
    %v825 = vrot.slane %v273, %v824
    %v826 = vlaneseq
    %v827 = vshrl.u32 %v826, 7
    %v828 = vsub.s32 6, %v827
    %v829 = vrot.slane %v278, %v828
    %v830 = vlaneseq
    %v831 = vshrl.u32 %v830, 7
    %v832 = vsub.s32 6, %v831
    %v833 = vrot.slane %v283, %v832
    %v834 = vlaneseq
    %v835 = vshrl.u32 %v834, 7
    %v836 = vsub.s32 6, %v835
    %v837 = vrot.slane %v288, %v836
    %v838 = vlaneseq
    %v839 = vshrl.u32 %v838, 7
    %v840 = vsub.s32 6, %v839
    %v841 = vrot.slane %v293, %v840
    %v842 = vlaneseq
    %v843 = vshrl.u32 %v842, 7
    %v844 = vsub.s32 6, %v843
    %v845 = vrot.slane %v298, %v844
    %v846 = vlaneseq
    %v847 = vshrl.u32 %v846, 7
    %v848 = vsub.s32 6, %v847
    %v849 = vrot.slane %v303, %v848
    %v850 = vmul.f32 %v788, %v821
    %v851 = vmul.f32 %v792, %v825
    %v852 = vmul.f32 %v796, %v829
    %v853 = vmul.f32 %v800, %v833
    %v854 = vmul.f32 %v804, %v837
    %v855 = vmul.f32 %v808, %v841
    %v856 = vmul.f32 %v812, %v845
    %v857 = vmul.f32 %v816, %v849
    %v858 = vadd.f32 %v778, %v850
    %v859 = vadd.f32 %v779, %v851
    %v860 = vadd.f32 %v780, %v852
    %v861 = vadd.f32 %v781, %v853
    %v862 = vadd.f32 %v782, %v854
    %v863 = vadd.f32 %v783, %v855
    %v864 = vadd.f32 %v784, %v856
    %v865 = vadd.f32 %v785, %v857
    %866 = vset.pattern.permute.xlu0 7
    %867 = vperm.xlu0 %866, %v168
    %v868 = vpop.permute.xlu0 %867
    %870 = vset.pattern.permute.xlu0 7
    %871 = vperm.xlu0 %870, %v169
    %v872 = vpop.permute.xlu0 %871
    %874 = vset.pattern.permute.xlu0 7
    %875 = vperm.xlu0 %874, %v170
    %v876 = vpop.permute.xlu0 %875
    %878 = vset.pattern.permute.xlu0 7
    %879 = vperm.xlu0 %878, %v171
    %v880 = vpop.permute.xlu0 %879
    %882 = vset.pattern.permute.xlu0 7
    %883 = vperm.xlu0 %882, %v172
    %v884 = vpop.permute.xlu0 %883
    %886 = vset.pattern.permute.xlu0 7
    %887 = vperm.xlu0 %886, %v173
    %v888 = vpop.permute.xlu0 %887
    %890 = vset.pattern.permute.xlu0 7
    %891 = vperm.xlu0 %890, %v174
    %v892 = vpop.permute.xlu0 %891
    %894 = vset.pattern.permute.xlu0 7
    %895 = vperm.xlu0 %894, %v175
    %v896 = vpop.permute.xlu0 %895
    %v898 = vlaneseq
    %v899 = vshrl.u32 %v898, 7
    %v900 = vsub.s32 7, %v899
    %v901 = vrot.slane %v268, %v900
    %v902 = vlaneseq
    %v903 = vshrl.u32 %v902, 7
    %v904 = vsub.s32 7, %v903
    %v905 = vrot.slane %v273, %v904
    %v906 = vlaneseq
    %v907 = vshrl.u32 %v906, 7
    %v908 = vsub.s32 7, %v907
    %v909 = vrot.slane %v278, %v908
    %v910 = vlaneseq
    %v911 = vshrl.u32 %v910, 7
    %v912 = vsub.s32 7, %v911
    %v913 = vrot.slane %v283, %v912
    %v914 = vlaneseq
    %v915 = vshrl.u32 %v914, 7
    %v916 = vsub.s32 7, %v915
    %v917 = vrot.slane %v288, %v916
    %v918 = vlaneseq
    %v919 = vshrl.u32 %v918, 7
    %v920 = vsub.s32 7, %v919
    %v921 = vrot.slane %v293, %v920
    %v922 = vlaneseq
    %v923 = vshrl.u32 %v922, 7
    %v924 = vsub.s32 7, %v923
    %v925 = vrot.slane %v298, %v924
    %v926 = vlaneseq
    %v927 = vshrl.u32 %v926, 7
    %v928 = vsub.s32 7, %v927
    %v929 = vrot.slane %v303, %v928
    %v930 = vmul.f32 %v868, %v901
    %v931 = vmul.f32 %v872, %v905
    %v932 = vmul.f32 %v876, %v909
    %v933 = vmul.f32 %v880, %v913
    %v934 = vmul.f32 %v884, %v917
    %v935 = vmul.f32 %v888, %v921
    %v936 = vmul.f32 %v892, %v925
    %v937 = vmul.f32 %v896, %v929
    %v938 = vadd.f32 %v858, %v930
    %v939 = vadd.f32 %v859, %v931
    %v940 = vadd.f32 %v860, %v932
    %v941 = vadd.f32 %v861, %v933
    %v942 = vadd.f32 %v862, %v934
    %v943 = vadd.f32 %v863, %v935
    %v944 = vadd.f32 %v864, %v936
    %v945 = vadd.f32 %v865, %v937
    %v947 = vlaneseq
    %v948 = vshrl.u32 %v947, 7
    %v949 = vsub.s32 0, %v948
    %v950 = vrot.slane %v102, %v949
    %v952 = vadd.f32 %v938, %v950
    %v953 = vadd.f32 %v939, %v950
    %v954 = vadd.f32 %v940, %v950
    %v955 = vadd.f32 %v941, %v950
    %v956 = vadd.f32 %v942, %v950
    %v957 = vadd.f32 %v943, %v950
    %v958 = vadd.f32 %v944, %v950
    %v959 = vadd.f32 %v945, %v950
    %v960 = vmax.f32 %v952, 0.0
    %v961 = vmax.f32 %v953, 0.0
    %v962 = vmax.f32 %v954, 0.0
    %v963 = vmax.f32 %v955, 0.0
    %v964 = vmax.f32 %v956, 0.0
    %v965 = vmax.f32 %v957, 0.0
    %v966 = vmax.f32 %v958, 0.0
    %v967 = vmax.f32 %v959, 0.0
    %v968 = vmul.f32 %v960, %v118
    %v969 = vmul.f32 %v961, %v125
    %v970 = vmul.f32 %v962, %v132
    %v971 = vmul.f32 %v963, %v139
    %v972 = vmul.f32 %v964, %v146
    %v973 = vmul.f32 %v965, %v153
    %v974 = vmul.f32 %v966, %v160
    %v975 = vmul.f32 %v967, %v167
    %v977 = vsel %vm176, %v968, 0
    %v980 = vsel %vm176, %v969, 0
    %v983 = vsel %vm176, %v970, 0
    %v986 = vsel %vm176, %v971, 0
    %v989 = vsel %vm176, %v972, 0
    %v992 = vsel %vm176, %v973, 0
    %v995 = vsel %vm176, %v974, 0
    %v998 = vsel %vm176, %v975, 0
    %1000 = vmatprep.subr.mxu0 0.0
    %1001 = vmatpush1.msra.mxu0 %v98
    %1002 = vmatprep.subr.mxu0 0.0
    %1003 = vmatpush1.msra.mxu0 %v99
    %1004 = vmatprep.subr.mxu0 0.0
    %1005 = vmatpush1.msra.mxu0 %v100
    %1006 = vmatprep.subr.mxu0 0.0
    %1007 = vmatpush1.msra.mxu0 %v101
    %1008 = vmatprep.subr.mxu0 0.0
    %1009 = vmatpush1.msra.mxu0 0.0
    %1010 = vmatprep.subr.mxu0 0.0
    %1011 = vmatpush1.msra.mxu0 0.0
    %1012 = vmatprep.subr.mxu0 0.0
    %1013 = vmatpush1.msra.mxu0 0.0
    %1014 = vmatprep.subr.mxu0 0.0
    %1015 = vmatpush1.msra.mxu0 0.0
    %1016 = vmatprep.subr.mxu0 0.0
    %1017 = vmatpush1.msra.mxu0 0.0
    %1018 = vmatprep.subr.mxu0 0.0
    %1019 = vmatpush1.msra.mxu0 0.0
    %1020 = vmatprep.subr.mxu0 0.0
    %1021 = vmatpush1.msra.mxu0 0.0
    %1022 = vmatprep.subr.mxu0 0.0
    %1023 = vmatpush1.msra.mxu0 0.0
    %1024 = vmatprep.subr.mxu0 0.0
    %1025 = vmatpush1.msra.mxu0 0.0
    %1026 = vmatprep.subr.mxu0 0.0
    %1027 = vmatpush1.msra.mxu0 0.0
    %1028 = vmatprep.subr.mxu0 0.0
    %1029 = vmatpush1.msra.mxu0 0.0
    %1030 = vmatprep.subr.mxu0 0.0
    %1031 = vmatpush1.msra.mxu0 0.0
    %1032 = vmatprep.subr.mxu0 0.0
    %1033 = vmatpush1.msra.mxu0 0.0
    %1034 = vmatprep.subr.mxu0 0.0
    %1035 = vmatpush1.msra.mxu0 0.0
    %1036 = vmatprep.subr.mxu0 0.0
    %1037 = vmatpush1.msra.mxu0 0.0
    %1038 = vmatprep.subr.mxu0 0.0
    %1039 = vmatpush1.msra.mxu0 0.0
    %1040 = vmatprep.subr.mxu0 0.0
    %1041 = vmatpush1.msra.mxu0 0.0
    %1042 = vmatprep.subr.mxu0 0.0
    %1043 = vmatpush1.msra.mxu0 0.0
    %1044 = vmatprep.subr.mxu0 0.0
    %1045 = vmatpush1.msra.mxu0 0.0
    %1046 = vmatprep.subr.mxu0 0.0
    %1047 = vmatpush1.msra.mxu0 0.0
    %1048 = vmatprep.subr.mxu0 0.0
    %1049 = vmatpush1.msra.mxu0 0.0
    %1050 = vmatprep.subr.mxu0 0.0
    %1051 = vmatpush1.msra.mxu0 0.0
    %1052 = vmatprep.subr.mxu0 0.0
    %1053 = vmatpush1.msra.mxu0 0.0
    %1054 = vmatprep.subr.mxu0 0.0
    %1055 = vmatpush1.msra.mxu0 0.0
    %1056 = vmatprep.subr.mxu0 0.0
    %1057 = vmatpush1.msra.mxu0 0.0
    %1058 = vmatprep.subr.mxu0 0.0
    %1059 = vmatpush1.msra.mxu0 0.0
    %1060 = vmatprep.subr.mxu0 0.0
    %1061 = vmatpush1.msra.mxu0 0.0
    %1062 = vmatprep.subr.mxu0 0.0
    %1063 = vmatpush1.msra.mxu0 0.0
    %1064 = vmatprep.mubr.f32.mxu0 0.0
    %1065 = vmatmul.mubr.f32.gmra.mrb[0].mxu0 %v977
    %v1066 = vpop.f32.mrb[0].mxu0
    %v1067 = vadd.f32 0.0, %v1066
    %v1068 = vpop.f32.mrb[0].mxu0
    %1069 = vmatprep.mubr.f32.mxu0 0.0
    %1070 = vmatmul.mubr.f32.gmra.mrb[0].mxu0 %v980
    %v1071 = vpop.f32.mrb[0].mxu0
    %v1072 = vadd.f32 0.0, %v1071
    %v1073 = vpop.f32.mrb[0].mxu0
    %1074 = vmatprep.mubr.f32.mxu0 0.0
    %1075 = vmatmul.mubr.f32.gmra.mrb[0].mxu0 %v983
    %v1076 = vpop.f32.mrb[0].mxu0
    %v1077 = vadd.f32 0.0, %v1076
    %v1078 = vpop.f32.mrb[0].mxu0
    %1079 = vmatprep.mubr.f32.mxu0 0.0
    %1080 = vmatmul.mubr.f32.gmra.mrb[0].mxu0 %v986
    %v1081 = vpop.f32.mrb[0].mxu0
    %v1082 = vadd.f32 0.0, %v1081
    %v1083 = vpop.f32.mrb[0].mxu0
    %1084 = vmatprep.mubr.f32.mxu0 0.0
    %1085 = vmatmul.mubr.f32.gmra.mrb[0].mxu0 %v989
    %v1086 = vpop.f32.mrb[0].mxu0
    %v1087 = vadd.f32 0.0, %v1086
    %v1088 = vpop.f32.mrb[0].mxu0
    %1089 = vmatprep.mubr.f32.mxu0 0.0
    %1090 = vmatmul.mubr.f32.gmra.mrb[0].mxu0 %v992
    %v1091 = vpop.f32.mrb[0].mxu0
    %v1092 = vadd.f32 0.0, %v1091
    %v1093 = vpop.f32.mrb[0].mxu0
    %1094 = vmatprep.mubr.f32.mxu0 0.0
    %1095 = vmatmul.mubr.f32.gmra.mrb[0].mxu0 %v995
    %v1096 = vpop.f32.mrb[0].mxu0
    %v1097 = vadd.f32 0.0, %v1096
    %v1098 = vpop.f32.mrb[0].mxu0
    %1099 = vmatprep.mubr.f32.mxu0 0.0
    %1100 = vmatmul.mubr.f32.gmra.mrb[0].mxu0 %v998
    %v1101 = vpop.f32.mrb[0].mxu0
    %v1102 = vadd.f32 0.0, %v1101
    %v1103 = vpop.f32.mrb[0].mxu0
    %1104 = vdwg.mxu0
    %v1105 = vlaneseq
    %v1106 = vshrl.u32 %v1105, 7
    %v1107 = vsub.s32 0, %v1106
    %v1108 = vrot.slane %v1067, %v1107
    %v1109 = vlaneseq
    %v1110 = vshrl.u32 %v1109, 7
    %v1111 = vsub.s32 0, %v1110
    %v1112 = vrot.slane %v1072, %v1111
    %v1113 = vlaneseq
    %v1114 = vshrl.u32 %v1113, 7
    %v1115 = vsub.s32 0, %v1114
    %v1116 = vrot.slane %v1077, %v1115
    %v1117 = vlaneseq
    %v1118 = vshrl.u32 %v1117, 7
    %v1119 = vsub.s32 0, %v1118
    %v1120 = vrot.slane %v1082, %v1119
    %v1121 = vlaneseq
    %v1122 = vshrl.u32 %v1121, 7
    %v1123 = vsub.s32 0, %v1122
    %v1124 = vrot.slane %v1087, %v1123
    %v1125 = vlaneseq
    %v1126 = vshrl.u32 %v1125, 7
    %v1127 = vsub.s32 0, %v1126
    %v1128 = vrot.slane %v1092, %v1127
    %v1129 = vlaneseq
    %v1130 = vshrl.u32 %v1129, 7
    %v1131 = vsub.s32 0, %v1130
    %v1132 = vrot.slane %v1097, %v1131
    %v1133 = vlaneseq
    %v1134 = vshrl.u32 %v1133, 7
    %v1135 = vsub.s32 0, %v1134
    %v1136 = vrot.slane %v1102, %v1135
    %v1137 = vmul.f32 %v309, %v1108
    %v1138 = vmul.f32 %v314, %v1112
    %v1139 = vmul.f32 %v319, %v1116
    %v1140 = vmul.f32 %v324, %v1120
    %v1141 = vmul.f32 %v329, %v1124
    %v1142 = vmul.f32 %v334, %v1128
    %v1143 = vmul.f32 %v339, %v1132
    %v1144 = vmul.f32 %v344, %v1136
    %v1145 = vlaneseq
    %v1146 = vshrl.u32 %v1145, 7
    %v1147 = vsub.s32 1, %v1146
    %v1148 = vrot.slane %v1067, %v1147
    %v1149 = vlaneseq
    %v1150 = vshrl.u32 %v1149, 7
    %v1151 = vsub.s32 1, %v1150
    %v1152 = vrot.slane %v1072, %v1151
    %v1153 = vlaneseq
    %v1154 = vshrl.u32 %v1153, 7
    %v1155 = vsub.s32 1, %v1154
    %v1156 = vrot.slane %v1077, %v1155
    %v1157 = vlaneseq
    %v1158 = vshrl.u32 %v1157, 7
    %v1159 = vsub.s32 1, %v1158
    %v1160 = vrot.slane %v1082, %v1159
    %v1161 = vlaneseq
    %v1162 = vshrl.u32 %v1161, 7
    %v1163 = vsub.s32 1, %v1162
    %v1164 = vrot.slane %v1087, %v1163
    %v1165 = vlaneseq
    %v1166 = vshrl.u32 %v1165, 7
    %v1167 = vsub.s32 1, %v1166
    %v1168 = vrot.slane %v1092, %v1167
    %v1169 = vlaneseq
    %v1170 = vshrl.u32 %v1169, 7
    %v1171 = vsub.s32 1, %v1170
    %v1172 = vrot.slane %v1097, %v1171
    %v1173 = vlaneseq
    %v1174 = vshrl.u32 %v1173, 7
    %v1175 = vsub.s32 1, %v1174
    %v1176 = vrot.slane %v1102, %v1175
    %v1177 = vmul.f32 %v388, %v1148
    %v1178 = vmul.f32 %v392, %v1152
    %v1179 = vmul.f32 %v396, %v1156
    %v1180 = vmul.f32 %v400, %v1160
    %v1181 = vmul.f32 %v404, %v1164
    %v1182 = vmul.f32 %v408, %v1168
    %v1183 = vmul.f32 %v412, %v1172
    %v1184 = vmul.f32 %v416, %v1176
    %v1185 = vadd.f32 %v1137, %v1177
    %v1186 = vadd.f32 %v1138, %v1178
    %v1187 = vadd.f32 %v1139, %v1179
    %v1188 = vadd.f32 %v1140, %v1180
    %v1189 = vadd.f32 %v1141, %v1181
    %v1190 = vadd.f32 %v1142, %v1182
    %v1191 = vadd.f32 %v1143, %v1183
    %v1192 = vadd.f32 %v1144, %v1184
    %v1193 = vlaneseq
    %v1194 = vshrl.u32 %v1193, 7
    %v1195 = vsub.s32 2, %v1194
    %v1196 = vrot.slane %v1067, %v1195
    %v1197 = vlaneseq
    %v1198 = vshrl.u32 %v1197, 7
    %v1199 = vsub.s32 2, %v1198
    %v1200 = vrot.slane %v1072, %v1199
    %v1201 = vlaneseq
    %v1202 = vshrl.u32 %v1201, 7
    %v1203 = vsub.s32 2, %v1202
    %v1204 = vrot.slane %v1077, %v1203
    %v1205 = vlaneseq
    %v1206 = vshrl.u32 %v1205, 7
    %v1207 = vsub.s32 2, %v1206
    %v1208 = vrot.slane %v1082, %v1207
    %v1209 = vlaneseq
    %v1210 = vshrl.u32 %v1209, 7
    %v1211 = vsub.s32 2, %v1210
    %v1212 = vrot.slane %v1087, %v1211
    %v1213 = vlaneseq
    %v1214 = vshrl.u32 %v1213, 7
    %v1215 = vsub.s32 2, %v1214
    %v1216 = vrot.slane %v1092, %v1215
    %v1217 = vlaneseq
    %v1218 = vshrl.u32 %v1217, 7
    %v1219 = vsub.s32 2, %v1218
    %v1220 = vrot.slane %v1097, %v1219
    %v1221 = vlaneseq
    %v1222 = vshrl.u32 %v1221, 7
    %v1223 = vsub.s32 2, %v1222
    %v1224 = vrot.slane %v1102, %v1223
    %v1225 = vmul.f32 %v468, %v1196
    %v1226 = vmul.f32 %v472, %v1200
    %v1227 = vmul.f32 %v476, %v1204
    %v1228 = vmul.f32 %v480, %v1208
    %v1229 = vmul.f32 %v484, %v1212
    %v1230 = vmul.f32 %v488, %v1216
    %v1231 = vmul.f32 %v492, %v1220
    %v1232 = vmul.f32 %v496, %v1224
    %v1233 = vadd.f32 %v1185, %v1225
    %v1234 = vadd.f32 %v1186, %v1226
    %v1235 = vadd.f32 %v1187, %v1227
    %v1236 = vadd.f32 %v1188, %v1228
    %v1237 = vadd.f32 %v1189, %v1229
    %v1238 = vadd.f32 %v1190, %v1230
    %v1239 = vadd.f32 %v1191, %v1231
    %v1240 = vadd.f32 %v1192, %v1232
    %v1241 = vlaneseq
    %v1242 = vshrl.u32 %v1241, 7
    %v1243 = vsub.s32 3, %v1242
    %v1244 = vrot.slane %v1067, %v1243
    %v1245 = vlaneseq
    %v1246 = vshrl.u32 %v1245, 7
    %v1247 = vsub.s32 3, %v1246
    %v1248 = vrot.slane %v1072, %v1247
    %v1249 = vlaneseq
    %v1250 = vshrl.u32 %v1249, 7
    %v1251 = vsub.s32 3, %v1250
    %v1252 = vrot.slane %v1077, %v1251
    %v1253 = vlaneseq
    %v1254 = vshrl.u32 %v1253, 7
    %v1255 = vsub.s32 3, %v1254
    %v1256 = vrot.slane %v1082, %v1255
    %v1257 = vlaneseq
    %v1258 = vshrl.u32 %v1257, 7
    %v1259 = vsub.s32 3, %v1258
    %v1260 = vrot.slane %v1087, %v1259
    %v1261 = vlaneseq
    %v1262 = vshrl.u32 %v1261, 7
    %v1263 = vsub.s32 3, %v1262
    %v1264 = vrot.slane %v1092, %v1263
    %v1265 = vlaneseq
    %v1266 = vshrl.u32 %v1265, 7
    %v1267 = vsub.s32 3, %v1266
    %v1268 = vrot.slane %v1097, %v1267
    %v1269 = vlaneseq
    %v1270 = vshrl.u32 %v1269, 7
    %v1271 = vsub.s32 3, %v1270
    %v1272 = vrot.slane %v1102, %v1271
    %v1273 = vmul.f32 %v548, %v1244
    %v1274 = vmul.f32 %v552, %v1248
    %v1275 = vmul.f32 %v556, %v1252
    %v1276 = vmul.f32 %v560, %v1256
    %v1277 = vmul.f32 %v564, %v1260
    %v1278 = vmul.f32 %v568, %v1264
    %v1279 = vmul.f32 %v572, %v1268
    %v1280 = vmul.f32 %v576, %v1272
    %v1281 = vadd.f32 %v1233, %v1273
    %v1282 = vadd.f32 %v1234, %v1274
    %v1283 = vadd.f32 %v1235, %v1275
    %v1284 = vadd.f32 %v1236, %v1276
    %v1285 = vadd.f32 %v1237, %v1277
    %v1286 = vadd.f32 %v1238, %v1278
    %v1287 = vadd.f32 %v1239, %v1279
    %v1288 = vadd.f32 %v1240, %v1280
    %v1289 = vlaneseq
    %v1290 = vshrl.u32 %v1289, 7
    %v1291 = vsub.s32 4, %v1290
    %v1292 = vrot.slane %v1067, %v1291
    %v1293 = vlaneseq
    %v1294 = vshrl.u32 %v1293, 7
    %v1295 = vsub.s32 4, %v1294
    %v1296 = vrot.slane %v1072, %v1295
    %v1297 = vlaneseq
    %v1298 = vshrl.u32 %v1297, 7
    %v1299 = vsub.s32 4, %v1298
    %v1300 = vrot.slane %v1077, %v1299
    %v1301 = vlaneseq
    %v1302 = vshrl.u32 %v1301, 7
    %v1303 = vsub.s32 4, %v1302
    %v1304 = vrot.slane %v1082, %v1303
    %v1305 = vlaneseq
    %v1306 = vshrl.u32 %v1305, 7
    %v1307 = vsub.s32 4, %v1306
    %v1308 = vrot.slane %v1087, %v1307
    %v1309 = vlaneseq
    %v1310 = vshrl.u32 %v1309, 7
    %v1311 = vsub.s32 4, %v1310
    %v1312 = vrot.slane %v1092, %v1311
    %v1313 = vlaneseq
    %v1314 = vshrl.u32 %v1313, 7
    %v1315 = vsub.s32 4, %v1314
    %v1316 = vrot.slane %v1097, %v1315
    %v1317 = vlaneseq
    %v1318 = vshrl.u32 %v1317, 7
    %v1319 = vsub.s32 4, %v1318
    %v1320 = vrot.slane %v1102, %v1319
    %v1321 = vmul.f32 %v628, %v1292
    %v1322 = vmul.f32 %v632, %v1296
    %v1323 = vmul.f32 %v636, %v1300
    %v1324 = vmul.f32 %v640, %v1304
    %v1325 = vmul.f32 %v644, %v1308
    %v1326 = vmul.f32 %v648, %v1312
    %v1327 = vmul.f32 %v652, %v1316
    %v1328 = vmul.f32 %v656, %v1320
    %v1329 = vadd.f32 %v1281, %v1321
    %v1330 = vadd.f32 %v1282, %v1322
    %v1331 = vadd.f32 %v1283, %v1323
    %v1332 = vadd.f32 %v1284, %v1324
    %v1333 = vadd.f32 %v1285, %v1325
    %v1334 = vadd.f32 %v1286, %v1326
    %v1335 = vadd.f32 %v1287, %v1327
    %v1336 = vadd.f32 %v1288, %v1328
    %v1337 = vlaneseq
    %v1338 = vshrl.u32 %v1337, 7
    %v1339 = vsub.s32 5, %v1338
    %v1340 = vrot.slane %v1067, %v1339
    %v1341 = vlaneseq
    %v1342 = vshrl.u32 %v1341, 7
    %v1343 = vsub.s32 5, %v1342
    %v1344 = vrot.slane %v1072, %v1343
    %v1345 = vlaneseq
    %v1346 = vshrl.u32 %v1345, 7
    %v1347 = vsub.s32 5, %v1346
    %v1348 = vrot.slane %v1077, %v1347
    %v1349 = vlaneseq
    %v1350 = vshrl.u32 %v1349, 7
    %v1351 = vsub.s32 5, %v1350
    %v1352 = vrot.slane %v1082, %v1351
    %v1353 = vlaneseq
    %v1354 = vshrl.u32 %v1353, 7
    %v1355 = vsub.s32 5, %v1354
    %v1356 = vrot.slane %v1087, %v1355
    %v1357 = vlaneseq
    %v1358 = vshrl.u32 %v1357, 7
    %v1359 = vsub.s32 5, %v1358
    %v1360 = vrot.slane %v1092, %v1359
    %v1361 = vlaneseq
    %v1362 = vshrl.u32 %v1361, 7
    %v1363 = vsub.s32 5, %v1362
    %v1364 = vrot.slane %v1097, %v1363
    %v1365 = vlaneseq
    %v1366 = vshrl.u32 %v1365, 7
    %v1367 = vsub.s32 5, %v1366
    %v1368 = vrot.slane %v1102, %v1367
    %v1369 = vmul.f32 %v708, %v1340
    %v1370 = vmul.f32 %v712, %v1344
    %v1371 = vmul.f32 %v716, %v1348
    %v1372 = vmul.f32 %v720, %v1352
    %v1373 = vmul.f32 %v724, %v1356
    %v1374 = vmul.f32 %v728, %v1360
    %v1375 = vmul.f32 %v732, %v1364
    %v1376 = vmul.f32 %v736, %v1368
    %v1377 = vadd.f32 %v1329, %v1369
    %v1378 = vadd.f32 %v1330, %v1370
    %v1379 = vadd.f32 %v1331, %v1371
    %v1380 = vadd.f32 %v1332, %v1372
    %v1381 = vadd.f32 %v1333, %v1373
    %v1382 = vadd.f32 %v1334, %v1374
    %v1383 = vadd.f32 %v1335, %v1375
    %v1384 = vadd.f32 %v1336, %v1376
    %v1385 = vlaneseq
    %v1386 = vshrl.u32 %v1385, 7
    %v1387 = vsub.s32 6, %v1386
    %v1388 = vrot.slane %v1067, %v1387
    %v1389 = vlaneseq
    %v1390 = vshrl.u32 %v1389, 7
    %v1391 = vsub.s32 6, %v1390
    %v1392 = vrot.slane %v1072, %v1391
    %v1393 = vlaneseq
    %v1394 = vshrl.u32 %v1393, 7
    %v1395 = vsub.s32 6, %v1394
    %v1396 = vrot.slane %v1077, %v1395
    %v1397 = vlaneseq
    %v1398 = vshrl.u32 %v1397, 7
    %v1399 = vsub.s32 6, %v1398
    %v1400 = vrot.slane %v1082, %v1399
    %v1401 = vlaneseq
    %v1402 = vshrl.u32 %v1401, 7
    %v1403 = vsub.s32 6, %v1402
    %v1404 = vrot.slane %v1087, %v1403
    %v1405 = vlaneseq
    %v1406 = vshrl.u32 %v1405, 7
    %v1407 = vsub.s32 6, %v1406
    %v1408 = vrot.slane %v1092, %v1407
    %v1409 = vlaneseq
    %v1410 = vshrl.u32 %v1409, 7
    %v1411 = vsub.s32 6, %v1410
    %v1412 = vrot.slane %v1097, %v1411
    %v1413 = vlaneseq
    %v1414 = vshrl.u32 %v1413, 7
    %v1415 = vsub.s32 6, %v1414
    %v1416 = vrot.slane %v1102, %v1415
    %v1417 = vmul.f32 %v788, %v1388
    %v1418 = vmul.f32 %v792, %v1392
    %v1419 = vmul.f32 %v796, %v1396
    %v1420 = vmul.f32 %v800, %v1400
    %v1421 = vmul.f32 %v804, %v1404
    %v1422 = vmul.f32 %v808, %v1408
    %v1423 = vmul.f32 %v812, %v1412
    %v1424 = vmul.f32 %v816, %v1416
    %v1425 = vadd.f32 %v1377, %v1417
    %v1426 = vadd.f32 %v1378, %v1418
    %v1427 = vadd.f32 %v1379, %v1419
    %v1428 = vadd.f32 %v1380, %v1420
    %v1429 = vadd.f32 %v1381, %v1421
    %v1430 = vadd.f32 %v1382, %v1422
    %v1431 = vadd.f32 %v1383, %v1423
    %v1432 = vadd.f32 %v1384, %v1424
    %v1433 = vlaneseq
    %v1434 = vshrl.u32 %v1433, 7
    %v1435 = vsub.s32 7, %v1434
    %v1436 = vrot.slane %v1067, %v1435
    %v1437 = vlaneseq
    %v1438 = vshrl.u32 %v1437, 7
    %v1439 = vsub.s32 7, %v1438
    %v1440 = vrot.slane %v1072, %v1439
    %v1441 = vlaneseq
    %v1442 = vshrl.u32 %v1441, 7
    %v1443 = vsub.s32 7, %v1442
    %v1444 = vrot.slane %v1077, %v1443
    %v1445 = vlaneseq
    %v1446 = vshrl.u32 %v1445, 7
    %v1447 = vsub.s32 7, %v1446
    %v1448 = vrot.slane %v1082, %v1447
    %v1449 = vlaneseq
    %v1450 = vshrl.u32 %v1449, 7
    %v1451 = vsub.s32 7, %v1450
    %v1452 = vrot.slane %v1087, %v1451
    %v1453 = vlaneseq
    %v1454 = vshrl.u32 %v1453, 7
    %v1455 = vsub.s32 7, %v1454
    %v1456 = vrot.slane %v1092, %v1455
    %v1457 = vlaneseq
    %v1458 = vshrl.u32 %v1457, 7
    %v1459 = vsub.s32 7, %v1458
    %v1460 = vrot.slane %v1097, %v1459
    %v1461 = vlaneseq
    %v1462 = vshrl.u32 %v1461, 7
    %v1463 = vsub.s32 7, %v1462
    %v1464 = vrot.slane %v1102, %v1463
    %v1465 = vmul.f32 %v868, %v1436
    %v1466 = vmul.f32 %v872, %v1440
    %v1467 = vmul.f32 %v876, %v1444
    %v1468 = vmul.f32 %v880, %v1448
    %v1469 = vmul.f32 %v884, %v1452
    %v1470 = vmul.f32 %v888, %v1456
    %v1471 = vmul.f32 %v892, %v1460
    %v1472 = vmul.f32 %v896, %v1464
    %v1473 = vadd.f32 %v1425, %v1465
    %v1474 = vadd.f32 %v1426, %v1466
    %v1475 = vadd.f32 %v1427, %v1467
    %v1476 = vadd.f32 %v1428, %v1468
    %v1477 = vadd.f32 %v1429, %v1469
    %v1478 = vadd.f32 %v1430, %v1470
    %v1479 = vadd.f32 %v1431, %v1471
    %v1480 = vadd.f32 %v1432, %v1472
    %v1482 = vlaneseq
    %v1483 = vshrl.u32 %v1482, 7
    %v1484 = vsub.s32 0, %v1483
    %v1485 = vrot.slane %v103, %v1484
    %v1487 = vadd.f32 %v1473, %v1485
    %v1488 = vadd.f32 %v1474, %v1485
    %v1489 = vadd.f32 %v1475, %v1485
    %v1490 = vadd.f32 %v1476, %v1485
    %v1491 = vadd.f32 %v1477, %v1485
    %v1492 = vadd.f32 %v1478, %v1485
    %v1493 = vadd.f32 %v1479, %v1485
    %v1494 = vadd.f32 %v1480, %v1485
    %v1495 = vmax.f32 %v1487, 0.0
    %v1496 = vmax.f32 %v1488, 0.0
    %v1497 = vmax.f32 %v1489, 0.0
    %v1498 = vmax.f32 %v1490, 0.0
    %v1499 = vmax.f32 %v1491, 0.0
    %v1500 = vmax.f32 %v1492, 0.0
    %v1501 = vmax.f32 %v1493, 0.0
    %v1502 = vmax.f32 %v1494, 0.0
    %v1503 = vmul.f32 %v1495, %v118
    %v1504 = vmul.f32 %v1496, %v125
    %v1505 = vmul.f32 %v1497, %v132
    %v1506 = vmul.f32 %v1498, %v139
    %v1507 = vmul.f32 %v1499, %v146
    %v1508 = vmul.f32 %v1500, %v153
    %v1509 = vmul.f32 %v1501, %v160
    %v1510 = vmul.f32 %v1502, %v167
    %v1511 = vcombine.low %v1503, %v1505
    %v1512 = vcombine.high %v1503, %v1505
    %v1514 = vunpack.c.l.s4 1983009808
    %v1515 = vunpack.c.0.s8 %v1514
    %v1516 = vlaneseq
    %v1517 = vshrl.u32 %v1516, 7
    %v1518 = vsub.s32 %v1515, %v1517
    %v1519 = vrot.slane %v1511, %v1518
    %v1521 = vunpack.c.l.s4 1983009808
    %v1522 = vunpack.c.0.s8 %v1521
    %v1523 = vlaneseq
    %v1524 = vshrl.u32 %v1523, 7
    %v1525 = vsub.s32 %v1522, %v1524
    %v1526 = vrot.slane %v1512, %v1525
    %v1527 = vcombine.low %v1504, %v1506
    %v1528 = vcombine.high %v1504, %v1506
    %v1530 = vunpack.c.l.s4 1983009808
    %v1531 = vunpack.c.0.s8 %v1530
    %v1532 = vlaneseq
    %v1533 = vshrl.u32 %v1532, 7
    %v1534 = vsub.s32 %v1531, %v1533
    %v1535 = vrot.slane %v1527, %v1534
    %v1537 = vunpack.c.l.s4 1983009808
    %v1538 = vunpack.c.0.s8 %v1537
    %v1539 = vlaneseq
    %v1540 = vshrl.u32 %v1539, 7
    %v1541 = vsub.s32 %v1538, %v1540
    %v1542 = vrot.slane %v1528, %v1541
    %v1543 = vcombine.low %v1507, %v1509
    %v1544 = vcombine.high %v1507, %v1509
    %v1546 = vunpack.c.l.s4 1983009808
    %v1547 = vunpack.c.0.s8 %v1546
    %v1548 = vlaneseq
    %v1549 = vshrl.u32 %v1548, 7
    %v1550 = vsub.s32 %v1547, %v1549
    %v1551 = vrot.slane %v1543, %v1550
    %v1553 = vunpack.c.l.s4 1983009808
    %v1554 = vunpack.c.0.s8 %v1553
    %v1555 = vlaneseq
    %v1556 = vshrl.u32 %v1555, 7
    %v1557 = vsub.s32 %v1554, %v1556
    %v1558 = vrot.slane %v1544, %v1557
    %v1559 = vcombine.low %v1508, %v1510
    %v1560 = vcombine.high %v1508, %v1510
    %v1562 = vunpack.c.l.s4 1983009808
    %v1563 = vunpack.c.0.s8 %v1562
    %v1564 = vlaneseq
    %v1565 = vshrl.u32 %v1564, 7
    %v1566 = vsub.s32 %v1563, %v1565
    %v1567 = vrot.slane %v1559, %v1566
    %v1569 = vunpack.c.l.s4 1983009808
    %v1570 = vunpack.c.0.s8 %v1569
    %v1571 = vlaneseq
    %v1572 = vshrl.u32 %v1571, 7
    %v1573 = vsub.s32 %v1570, %v1572
    %v1574 = vrot.slane %v1560, %v1573
    %v1575 = vcombine.low %v1519, %v1535
    %v1576 = vcombine.high %v1519, %v1535
    %v1578 = vunpack.c.l.s4 1934713408
    %v1579 = vunpack.c.0.s8 %v1578
    %v1580 = vlaneseq
    %v1581 = vshrl.u32 %v1580, 7
    %v1582 = vsub.s32 %v1579, %v1581
    %v1583 = vrot.slane %v1575, %v1582
    %v1585 = vunpack.c.l.s4 1934713408
    %v1586 = vunpack.c.0.s8 %v1585
    %v1587 = vlaneseq
    %v1588 = vshrl.u32 %v1587, 7
    %v1589 = vsub.s32 %v1586, %v1588
    %v1590 = vrot.slane %v1576, %v1589
    %v1591 = vcombine.low %v1526, %v1542
    %v1592 = vcombine.high %v1526, %v1542
    %v1594 = vunpack.c.l.s4 1934713408
    %v1595 = vunpack.c.0.s8 %v1594
    %v1596 = vlaneseq
    %v1597 = vshrl.u32 %v1596, 7
    %v1598 = vsub.s32 %v1595, %v1597
    %v1599 = vrot.slane %v1591, %v1598
    %v1601 = vunpack.c.l.s4 1934713408
    %v1602 = vunpack.c.0.s8 %v1601
    %v1603 = vlaneseq
    %v1604 = vshrl.u32 %v1603, 7
    %v1605 = vsub.s32 %v1602, %v1604
    %v1606 = vrot.slane %v1592, %v1605
    %v1607 = vcombine.low %v1551, %v1567
    %v1608 = vcombine.high %v1551, %v1567
    %v1610 = vunpack.c.l.s4 1934713408
    %v1611 = vunpack.c.0.s8 %v1610
    %v1612 = vlaneseq
    %v1613 = vshrl.u32 %v1612, 7
    %v1614 = vsub.s32 %v1611, %v1613
    %v1615 = vrot.slane %v1607, %v1614
    %v1617 = vunpack.c.l.s4 1934713408
    %v1618 = vunpack.c.0.s8 %v1617
    %v1619 = vlaneseq
    %v1620 = vshrl.u32 %v1619, 7
    %v1621 = vsub.s32 %v1618, %v1620
    %v1622 = vrot.slane %v1608, %v1621
    %v1623 = vcombine.low %v1558, %v1574
    %v1624 = vcombine.high %v1558, %v1574
    %v1626 = vunpack.c.l.s4 1934713408
    %v1627 = vunpack.c.0.s8 %v1626
    %v1628 = vlaneseq
    %v1629 = vshrl.u32 %v1628, 7
    %v1630 = vsub.s32 %v1627, %v1629
    %v1631 = vrot.slane %v1623, %v1630
    %v1633 = vunpack.c.l.s4 1934713408
    %v1634 = vunpack.c.0.s8 %v1633
    %v1635 = vlaneseq
    %v1636 = vshrl.u32 %v1635, 7
    %v1637 = vsub.s32 %v1634, %v1636
    %v1638 = vrot.slane %v1624, %v1637
    %v1639 = vcombine.low %v1583, %v1615
    %v1640 = vcombine.high %v1583, %v1615
    %v1641 = vcombine.low %v1590, %v1622
    %v1642 = vcombine.high %v1590, %v1622
    %v1643 = vcombine.low %v1599, %v1631
    %v1644 = vcombine.high %v1599, %v1631
    %v1645 = vcombine.low %v1606, %v1638
    %v1646 = vcombine.high %v1606, %v1638
    %1648 = vrot.lane.b32.xlu0 %v1640, 32
    %v1649 = vpop.permute.xlu0 %1648
    %1652 = vrot.lane.b32.xlu0 %v1641, 64
    %v1653 = vpop.permute.xlu0 %1652
    %1656 = vrot.lane.b32.xlu0 %v1642, 96
    %v1657 = vpop.permute.xlu0 %1656
    %1660 = vrot.lane.b32.xlu0 %v1644, 32
    %v1661 = vpop.permute.xlu0 %1660
    %1664 = vrot.lane.b32.xlu0 %v1645, 64
    %v1665 = vpop.permute.xlu0 %1664
    %1668 = vrot.lane.b32.xlu0 %v1646, 96
    %v1669 = vpop.permute.xlu0 %1668
    %v1671 = vsel %vm176, %v1639, %v1649
    %vm1672 = vcmask 523264
    %v1673 = vsel %vm1672, %v1671, %v1653
    %vm1674 = vcmask 785408
    %v1675 = vsel %vm1674, %v1673, %v1657
    %v1676 = vsel %vm176, %v1643, %v1661
    %v1677 = vsel %vm1672, %v1676, %v1665
    %v1678 = vsel %vm1674, %v1677, %v1669
    %1679 = vst [vmem:[#allocation10] sm:$0xff] %v1675
    %1680 = vst [vmem:[#allocation10 + $0x8] sm:$0xff] %v1678
    %vm1681 = vcmp.gt.s32.totalorder %v93, 1
    %v1682 = vsel %vm1681, %v93, 1
    %vm1683 = vcmp.lt.s32.totalorder %v1682, 8
    %v1684 = vsel %vm1683, %v1682, 8
    %v1685 = vcvt.s32.f32 %v1684
    %v1686 = vrcp.pop %v1685
    %v1687 = vmul.f32 1.0, %v1686
    %v1688 = vsel %vm176, %v968, 0.0
    %v1689 = vrot.slane %v1688, 4
    %v1690 = vadd.f32 %v1688, %v1689
    %v1691 = vrot.slane %v1690, 2
    %v1692 = vadd.f32 %v1690, %v1691
    %v1693 = vrot.slane %v1692, 1
    %v1694 = vadd.f32 %v1692, %v1693
    %v1695 = vsel %vm176, %v969, 0.0
    %v1696 = vrot.slane %v1695, 4
    %v1697 = vadd.f32 %v1695, %v1696
    %v1698 = vrot.slane %v1697, 2
    %v1699 = vadd.f32 %v1697, %v1698
    %v1700 = vrot.slane %v1699, 1
    %v1701 = vadd.f32 %v1699, %v1700
    %v1702 = vsel %vm176, %v970, 0.0
    %v1703 = vrot.slane %v1702, 4
    %v1704 = vadd.f32 %v1702, %v1703
    %v1705 = vrot.slane %v1704, 2
    %v1706 = vadd.f32 %v1704, %v1705
    %v1707 = vrot.slane %v1706, 1
    %v1708 = vadd.f32 %v1706, %v1707
    %v1709 = vsel %vm176, %v971, 0.0
    %v1710 = vrot.slane %v1709, 4
    %v1711 = vadd.f32 %v1709, %v1710
    %v1712 = vrot.slane %v1711, 2
    %v1713 = vadd.f32 %v1711, %v1712
    %v1714 = vrot.slane %v1713, 1
    %v1715 = vadd.f32 %v1713, %v1714
    %v1716 = vsel %vm176, %v972, 0.0
    %v1717 = vrot.slane %v1716, 4
    %v1718 = vadd.f32 %v1716, %v1717
    %v1719 = vrot.slane %v1718, 2
    %v1720 = vadd.f32 %v1718, %v1719
    %v1721 = vrot.slane %v1720, 1
    %v1722 = vadd.f32 %v1720, %v1721
    %v1723 = vsel %vm176, %v973, 0.0
    %v1724 = vrot.slane %v1723, 4
    %v1725 = vadd.f32 %v1723, %v1724
    %v1726 = vrot.slane %v1725, 2
    %v1727 = vadd.f32 %v1725, %v1726
    %v1728 = vrot.slane %v1727, 1
    %v1729 = vadd.f32 %v1727, %v1728
    %v1730 = vsel %vm176, %v974, 0.0
    %v1731 = vrot.slane %v1730, 4
    %v1732 = vadd.f32 %v1730, %v1731
    %v1733 = vrot.slane %v1732, 2
    %v1734 = vadd.f32 %v1732, %v1733
    %v1735 = vrot.slane %v1734, 1
    %v1736 = vadd.f32 %v1734, %v1735
    %v1737 = vsel %vm176, %v975, 0.0
    %v1738 = vrot.slane %v1737, 4
    %v1739 = vadd.f32 %v1737, %v1738
    %v1740 = vrot.slane %v1739, 2
    %v1741 = vadd.f32 %v1739, %v1740
    %v1742 = vrot.slane %v1741, 1
    %v1743 = vadd.f32 %v1741, %v1742
    %1745 = vset.pattern.permute.xlu0 0
    %1746 = vperm.xlu0 %1745, %v1687
    %v1747 = vpop.permute.xlu0 %1746
    %v1748 = vrot.slane %v1747, 1
    %v1749 = vrot.slane %v1747, 2
    %v1750 = vrot.slane %v1747, 3
    %v1751 = vrot.slane %v1747, 4
    %v1752 = vrot.slane %v1747, 5
    %v1753 = vrot.slane %v1747, 6
    %v1754 = vrot.slane %v1747, 7
    %v1763 = vmul.f32 %v1694, %v1747
    %v1764 = vmul.f32 %v1701, %v1748
    %v1765 = vmul.f32 %v1708, %v1749
    %v1766 = vmul.f32 %v1715, %v1750
    %v1767 = vmul.f32 %v1722, %v1751
    %v1768 = vmul.f32 %v1729, %v1752
    %v1769 = vmul.f32 %v1736, %v1753
    %v1770 = vmul.f32 %v1743, %v1754
    %v1779 = vrot.slane %v1764, 7
    %vm1780 = vcmask 1041409
    %v1781 = vsel %vm1780, %v1779, %v1763
    %v1782 = vrot.slane %v1765, 6
    %vm1783 = vcmask 1042434
    %v1784 = vsel %vm1783, %v1782, %v1781
    %v1785 = vrot.slane %v1766, 5
    %vm1786 = vcmask 1043459
    %v1787 = vsel %vm1786, %v1785, %v1784
    %v1788 = vrot.slane %v1767, 4
    %vm1789 = vcmask 1044484
    %v1790 = vsel %vm1789, %v1788, %v1787
    %v1791 = vrot.slane %v1768, 3
    %vm1792 = vcmask 1045509
    %v1793 = vsel %vm1792, %v1791, %v1790
    %v1794 = vrot.slane %v1769, 2
    %vm1795 = vcmask 1046534
    %v1796 = vsel %vm1795, %v1794, %v1793
    %v1797 = vrot.slane %v1770, 1
    %vm1798 = vcmask 1047559
    %v1799 = vsel %vm1798, %v1797, %v1796
    %1801 = vst.msk [vmem:[#allocation11] sm:$0xff] %vm176, %v1799
    // Predicated region
    $region46: #{tpu_custom_call.1} parent=1 // pred_check
      _
    $region47: #{tpu_custom_call.1} parent=1 // pred_check_branch
      %1803 = sbr.rel (0) target = $region49
    $region48: #{tpu_custom_call.1} parent=1 // pred_region
      %s1805 = ssub.s32 256, 256
      %1806 = vsyncadd [#allocation4], %s1805
      %s1808 = sshll.u32 [#allocation10], 4
      %s1809 = int_to_ptr.vmem [resolvable:$true] %s1808
      %1811 = dma.vmem_to_hbm [thread:$0]  %s1809, 256, %s7, [#allocation4]
    $region49: #{tpu_custom_call.1} parent=1 // pred_fallthru
      _
    // Predicated region
    $region50: #{tpu_custom_call.1} parent=1 // pred_check
      _
    $region51: #{tpu_custom_call.1} parent=1 // pred_check_branch
      %1813 = sbr.rel (0) target = $region53
    $region52: #{tpu_custom_call.1} parent=1 // pred_region
      %s1815 = ssub.s32 128, 128
      %1816 = vsyncadd [#allocation12], %s1815
      %s1818 = sshll.u32 [#allocation11], 4
      %s1819 = int_to_ptr.vmem [resolvable:$true] %s1818
      %1821 = dma.vmem_to_hbm [thread:$0]  %s1819, 128, %s8, [#allocation12]
    $region53: #{tpu_custom_call.1} parent=1 // pred_fallthru
      _
    // Predicated region
    $region54: #{tpu_custom_call.1} parent=1 // pred_check
      _
    $region55: #{tpu_custom_call.1} parent=1 // pred_check_branch
      %1823 = sbr.rel (0) target = $region57
    $region56: #{tpu_custom_call.1} parent=1 // pred_region
      %1824 = dma.done [#allocation4], 256
    $region57: #{tpu_custom_call.1} parent=1 // pred_fallthru
      _
    // Predicated region
    $region58: #{tpu_custom_call.1} parent=1 // pred_check
      _
    $region59: #{tpu_custom_call.1} parent=1 // pred_check_branch
      %1826 = sbr.rel (0) target = $region61
    $region60: #{tpu_custom_call.1} parent=1 // pred_region
      %1827 = dma.done [#allocation12], 128
    $region61: #{tpu_custom_call.1} parent=1 // pred_fallthru
      _
    %1828 = vsyncpa [#allocation3], 1
    %1829 = vsyncpa [#allocation6], 1
    %1830 = vsyncpa [#allocation9], 1
    %1831 = vsyncpa [#allocation4], 1
    %1832 = vsyncpa [#allocation12], 1

</llo_original>
